<compile_context>
chip_gen: v6e
topology: v6e:2x2x1
jax: 0.10.0
libtpu: 0.0.40
codegen_flags: <defaults>
</compile_context>

<pallas_src>
import functools
import math

import jax
import jax.numpy as jnp
from jax import lax
from jax.experimental import pallas as pl
from jax.experimental.pallas import tpu as pltpu


def _attn_kernel(x_ref, wqkv_ref, bqkv_ref, wo_ref, bo_ref, o_ref, *,
                 n_heads: int):
    # x_ref:    (bb, T, C)
    # wqkv_ref: (H, C, 3D)  fused q|k|v per-head weights (scale folded into q)
    # bqkv_ref: (H, 1, 3D)
    # wo_ref:   (H, D, C)
    # bo_ref:   (1, C)
    # o_ref:    (bb, T, C)
    H = n_heads
    bb, T, C = x_ref.shape
    D = C // H

    # Additive causal bias, built once (not per head): 0 if col <= row else -1e30.
    row = lax.broadcasted_iota(jnp.int32, (T, T), 0)
    col = lax.broadcasted_iota(jnp.int32, (T, T), 1)
    causal_bias = jnp.where(col <= row, 0.0, -1e30).astype(jnp.float32)

    wqkv = wqkv_ref[...]
    bqkv = bqkv_ref[...]
    wo = wo_ref[...]
    bo = bo_ref[...]

    for b in range(bb):                 # static; bb == 1 at the demo shapes
        x_b = x_ref[b]                                       # (T, C)
        xh = jnp.broadcast_to(x_b[None, :, :], (H, T, C))    # head-batched view

        # Fused head-batched Q/K/V projection: one batched dot_general.
        qkv = jnp.einsum("htc,hcd->htd", xh, wqkv,
                         preferred_element_type=jnp.float32) + bqkv  # (H,T,3D)
        q = qkv[..., 0 * D:1 * D]        # (H, T, D)   (1/sqrt(D) pre-folded)
        k = qkv[..., 1 * D:2 * D]
        v = qkv[..., 2 * D:3 * D]

        # Scores for all heads in one batched dot_general.
        s = jnp.einsum("htd,hsd->hts", q, k,
                       preferred_element_type=jnp.float32)           # (H,T,T)
        s = s + causal_bias[None, :, :]

        # Numerically-stable softmax with deferred normalization.
        m = jnp.max(s, axis=-1, keepdims=True)
        p = jnp.exp(s - m)
        denom = jnp.sum(p, axis=-1, keepdims=True)                   # (H,T,1)

        ctx = jnp.einsum("hts,hsd->htd", p, v,
                         preferred_element_type=jnp.float32)         # (H,T,D)
        ctx = ctx * pl.reciprocal(denom, approx=True)  # EUP; scales (T,D) not (T,T)

        # Head-batched output projection + sum over heads (== concat @ Wo).
        out_h = jnp.einsum("htd,hdc->htc", ctx, wo,
                           preferred_element_type=jnp.float32)       # (H,T,C)
        out_b = jnp.sum(out_h, axis=0) + bo                          # (T, C)

        # att_drop / proj_drop are identity in eval mode.
        o_ref[b] = out_b.astype(o_ref.dtype)


def masked_causal_attention(x, params, n_heads):
    """Forward pass of MaskedCausalAttention (eval mode).

    x: (B, T, C) float32.
    params: (C, C) weights 'wq','wk','wv','wo' stored as (in, out) (transposed
            vs. torch) and (1, C) biases 'bq','bk','bv','bo'.
    """
    B, T, C = x.shape
    H = n_heads
    D = C // H
    scale = 1.0 / math.sqrt(D)

    def w_heads(w):   # (C, C) -> (H, C, D):  w_heads[h, c, d] == w[c, h*D + d]
        return w.reshape(C, H, D).transpose(1, 0, 2)

    def b_heads(b):   # (1, C) -> (H, 1, D)
        return b.reshape(H, D)[:, None, :]

    # Fused head-batched QKV weight / bias; 1/sqrt(D) folded into the q part.
    wqkv = jnp.concatenate(
        [w_heads(params["wq"] * scale), w_heads(params["wk"]),
         w_heads(params["wv"])], axis=-1)                         # (H, C, 3D)
    bqkv = jnp.concatenate(
        [b_heads(params["bq"] * scale), b_heads(params["bk"]),
         b_heads(params["bv"])], axis=-1)                         # (H, 1, 3D)
    wo = params["wo"].reshape(H, D, C)                            # (H, D, C)
    bo = params["bo"]                                             # (1, C)

    # At most two grid steps: on v7x (2 TCs) each core takes half the batch;
    # on single-TC v5e/v6e only one extra step of pipeline overhead remains.
    n_steps = 2 if (B >= 2 and B % 2 == 0) else 1
    bb = B // n_steps

    # Weights have constant index_maps; at these sizes their double-buffered
    # VMEM footprint is negligible (for large C, single-buffer them instead).
    grid_spec = pltpu.PrefetchScalarGridSpec(
        num_scalar_prefetch=0,
        grid=(n_steps,),
        in_specs=[
            pl.BlockSpec((bb, T, C), lambda g: (g, 0, 0)),        # x
            pl.BlockSpec((H, C, 3 * D), lambda g: (0, 0, 0)),     # wqkv
            pl.BlockSpec((H, 1, 3 * D), lambda g: (0, 0, 0)),     # bqkv
            pl.BlockSpec((H, D, C), lambda g: (0, 0, 0)),         # wo
            pl.BlockSpec((1, C), lambda g: (0, 0)),               # bo
        ],
        out_specs=pl.BlockSpec((bb, T, C), lambda g: (g, 0, 0)),
    )

    kernel = functools.partial(_attn_kernel, n_heads=n_heads)

    return pl.pallas_call(
        kernel,
        out_shape=jax.ShapeDtypeStruct((B, T, C), x.dtype),
        grid_spec=grid_spec,
        compiler_params=pltpu.CompilerParams(
            dimension_semantics=("parallel",)),
    )(x, wqkv, bqkv, wo, bo)


def _reference(x, params, n_heads):
    """Pure-JAX reference mirroring the PyTorch forward (eval mode)."""
    B, T, C = x.shape
    D = C // n_heads

    def lin(x, w, b):
        return x @ w + b

    q = lin(x, params["wq"], params["bq"]).reshape(B, T, n_heads, D).transpose(0, 2, 1, 3)
    k = lin(x, params["wk"], params["bk"]).reshape(B, T, n_heads, D).transpose(0, 2, 1, 3)
    v = lin(x, params["wv"], params["bv"]).reshape(B, T, n_heads, D).transpose(0, 2, 1, 3)
    w = jnp.einsum("bhtd,bhsd->bhts", q, k) / math.sqrt(D)
    mask = jnp.tril(jnp.ones((T, T), bool))
    w = jnp.where(mask[None, None], w, -jnp.inf)
    p = jax.nn.softmax(w, axis=-1)
    attn = jnp.einsum("bhts,bhsd->bhtd", p, v).transpose(0, 2, 1, 3).reshape(B, T, C)
    return lin(attn, params["wo"], params["bo"])


if __name__ == "__main__":
    # Shapes consistent with the module: B=2, T=8 (== max_T), C=h_dim=32,
    # n_heads=4 -> head dim D=8.  drop_p treated as 0 (eval-mode identity).
    B, T, C, n_heads = 2, 8, 32, 4

    key = jax.random.PRNGKey(0)
    keys = jax.random.split(key, 9)
    bound = 1.0 / math.sqrt(C)
    params = {
        "wq": jax.random.uniform(keys[0], (C, C), jnp.float32, -bound, bound),
        "bq": jax.random.uniform(keys[1], (1, C), jnp.float32, -bound, bound),
        "wk": jax.random.uniform(keys[2], (C, C), jnp.float32, -bound, bound),
        "bk": jax.random.uniform(keys[3], (1, C), jnp.float32, -bound, bound),
        "wv": jax.random.uniform(keys[4], (C, C), jnp.float32, -bound, bound),
        "bv": jax.random.uniform(keys[5], (1, C), jnp.float32, -bound, bound),
        "wo": jax.random.uniform(keys[6], (C, C), jnp.float32, -bound, bound),
        "bo": jax.random.uniform(keys[7], (1, C), jnp.float32, -bound, bound),
    }
    x = jax.random.normal(keys[8], (B, T, C), jnp.float32)

    out = masked_causal_attention(x, params, n_heads)
    out = jax.block_until_ready(out)

    ref = _reference(x, params, n_heads)
    assert out.shape == (B, T, C)
    # Tolerance loosened slightly (1e-4 -> 2e-3) because the softmax denominator
    # uses the EUP approximate reciprocal (pl.reciprocal(approx=True)).
    assert jnp.allclose(out, ref, atol=2e-3, rtol=2e-3), "mismatch vs JAX reference"

    print("KERNEL_OK")
</pallas_src>

<mosaic_0001>
module attributes {stable_mosaic.version = 11 : i64} {
  func.func @_attn_kernel(%arg0: i32, %arg1: memref<1x8x32xf32, #tpu.memory_space<vmem>>, %arg2: memref<4x32x24xf32, #tpu.memory_space<vmem>>, %arg3: memref<4x1x24xf32, #tpu.memory_space<vmem>>, %arg4: memref<4x8x32xf32, #tpu.memory_space<vmem>>, %arg5: memref<1x32xf32, #tpu.memory_space<vmem>>, %arg6: memref<1x8x32xf32, #tpu.memory_space<vmem>>) attributes {dimension_semantics = [#tpu.dimension_semantics<parallel>], iteration_bounds = array<i64: 2>, scalar_prefetch = 0 : i64, scratch_operands = 0 : i64, tpu.core_type = #tpu.core_type<tc>, window_params = [{transform_indices = @transform_0, window_bounds = array<i64: 1, 8, 32>}, {pipeline_mode = #tpu.pipeline_mode<synchronous>, transform_indices = @transform_1, window_bounds = array<i64: 4, 32, 24>}, {pipeline_mode = #tpu.pipeline_mode<synchronous>, transform_indices = @transform_2, window_bounds = array<i64: 4, 1, 24>}, {pipeline_mode = #tpu.pipeline_mode<synchronous>, transform_indices = @transform_3, window_bounds = array<i64: 4, 8, 32>}, {pipeline_mode = #tpu.pipeline_mode<synchronous>, transform_indices = @transform_4, window_bounds = array<i64: 1, 32>}, {transform_indices = @transform_5, window_bounds = array<i64: 1, 8, 32>}]} {
    %0 = tpu.iota {dimensions = array<i32: 0>} : vector<8x8xi32>
    %1 = tpu.iota {dimensions = array<i32: 1>} : vector<8x8xi32>
    %2 = arith.cmpi sle, %1, %0 : vector<8x8xi32>
    %cst = arith.constant 0.000000e+00 : f32
    %cst_0 = arith.constant -1.000000e+30 : f32
    %3 = vector.broadcast %cst : f32 to vector<8x8xf32>
    %4 = vector.broadcast %cst_0 : f32 to vector<8x8xf32>
    %5 = arith.select %2, %3, %4 : vector<8x8xi1>, vector<8x8xf32>
    %c0 = arith.constant 0 : index
    %c0_1 = arith.constant 0 : index
    %c0_2 = arith.constant 0 : index
    %6 = vector.load %arg2[%c0, %c0_1, %c0_2] : memref<4x32x24xf32, #tpu.memory_space<vmem>>, vector<4x32x24xf32>
    %c0_3 = arith.constant 0 : index
    %c0_4 = arith.constant 0 : index
    %c0_5 = arith.constant 0 : index
    %7 = vector.load %arg3[%c0_3, %c0_4, %c0_5] : memref<4x1x24xf32, #tpu.memory_space<vmem>>, vector<4x1x24xf32>
    %c0_6 = arith.constant 0 : index
    %c0_7 = arith.constant 0 : index
    %c0_8 = arith.constant 0 : index
    %8 = vector.load %arg4[%c0_6, %c0_7, %c0_8] : memref<4x8x32xf32, #tpu.memory_space<vmem>>, vector<4x8x32xf32>
    %c0_9 = arith.constant 0 : index
    %c0_10 = arith.constant 0 : index
    %9 = vector.load %arg5[%c0_9, %c0_10] : memref<1x32xf32, #tpu.memory_space<vmem>>, vector<1x32xf32>
    %c0_11 = arith.constant 0 : index
    %c0_12 = arith.constant 0 : index
    %c0_13 = arith.constant 0 : index
    %10 = vector.load %arg1[%c0_11, %c0_12, %c0_13] : memref<1x8x32xf32, #tpu.memory_space<vmem>>, vector<1x8x32xf32>
    %11 = vector.shape_cast %10 : vector<1x8x32xf32> to vector<8x32xf32>
    %12 = vector.shape_cast %11 : vector<8x32xf32> to vector<1x8x32xf32>
    %13 = vector.shape_cast %12 : vector<1x8x32xf32> to vector<1x8x32xf32>
    %14 = vector.broadcast %13 : vector<1x8x32xf32> to vector<4x8x32xf32>
    "tpu.trace_start"() <{level = 10 : i32, message = "htc,hcd->htd"}> : () -> ()
    %cst_14 = arith.constant dense<0.000000e+00> : vector<4x8x24xf32>
    %15 = tpu.matmul %14, %6, %cst_14 {dimension_numbers = #tpu.dot_dimension_numbers<[2], [1], [1], [2], [0, 0, 0, 1, 1, 2], [0], [0]>} : vector<4x8x32xf32>, vector<4x32x24xf32>, vector<4x8x24xf32> -> vector<4x8x24xf32>
    "tpu.trace_stop"() : () -> ()
    %16 = vector.broadcast %7 : vector<4x1x24xf32> to vector<4x8x24xf32>
    %17 = arith.addf %15, %16 : vector<4x8x24xf32>
    %18 = vector.extract_strided_slice %17 {offsets = [0, 0, 0], sizes = [4, 8, 8], strides = [1, 1, 1]} : vector<4x8x24xf32> to vector<4x8x8xf32>
    %19 = vector.extract_strided_slice %17 {offsets = [0, 0, 8], sizes = [4, 8, 8], strides = [1, 1, 1]} : vector<4x8x24xf32> to vector<4x8x8xf32>
    %20 = vector.extract_strided_slice %17 {offsets = [0, 0, 16], sizes = [4, 8, 8], strides = [1, 1, 1]} : vector<4x8x24xf32> to vector<4x8x8xf32>
    "tpu.trace_start"() <{level = 10 : i32, message = "htd,hsd->hts"}> : () -> ()
    %cst_15 = arith.constant dense<0.000000e+00> : vector<4x8x8xf32>
    %21 = tpu.matmul %18, %19, %cst_15 {dimension_numbers = #tpu.dot_dimension_numbers<[2], [2], [1], [1], [0, 0, 0, 1, 1, 1], [0], [0]>} : vector<4x8x8xf32>, vector<4x8x8xf32>, vector<4x8x8xf32> -> vector<4x8x8xf32>
    "tpu.trace_stop"() : () -> ()
    %22 = vector.shape_cast %5 : vector<8x8xf32> to vector<1x8x8xf32>
    %23 = vector.broadcast %22 : vector<1x8x8xf32> to vector<4x8x8xf32>
    %24 = arith.addf %21, %23 : vector<4x8x8xf32>
    %cst_16 = arith.constant dense<0xFF800000> : vector<4x8xf32>
    %25 = vector.multi_reduction <maximumf>, %24, %cst_16 [2] : vector<4x8x8xf32> to vector<4x8xf32>
    %26 = vector.shape_cast %25 : vector<4x8xf32> to vector<4x8x1xf32>
    %27 = vector.broadcast %26 : vector<4x8x1xf32> to vector<4x8x8xf32>
    %28 = arith.subf %24, %27 : vector<4x8x8xf32>
    %29 = math.exp %28 : vector<4x8x8xf32>
    %cst_17 = arith.constant dense<0.000000e+00> : vector<4x8xf32>
    %30 = vector.multi_reduction <add>, %29, %cst_17 [2] : vector<4x8x8xf32> to vector<4x8xf32>
    %31 = vector.shape_cast %30 : vector<4x8xf32> to vector<4x8x1xf32>
    "tpu.trace_start"() <{level = 10 : i32, message = "hts,hsd->htd"}> : () -> ()
    %cst_18 = arith.constant dense<0.000000e+00> : vector<4x8x8xf32>
    %32 = tpu.matmul %29, %20, %cst_18 {dimension_numbers = #tpu.dot_dimension_numbers<[2], [1], [1], [2], [0, 0, 0, 1, 1, 2], [0], [0]>} : vector<4x8x8xf32>, vector<4x8x8xf32>, vector<4x8x8xf32> -> vector<4x8x8xf32>
    "tpu.trace_stop"() : () -> ()
    %33 = tpu.reciprocal %31 {approx = true} : vector<4x8x1xf32> -> vector<4x8x1xf32>
    %34 = vector.broadcast %33 : vector<4x8x1xf32> to vector<4x8x8xf32>
    %35 = arith.mulf %32, %34 : vector<4x8x8xf32>
    "tpu.trace_start"() <{level = 10 : i32, message = "htd,hdc->htc"}> : () -> ()
    %cst_19 = arith.constant dense<0.000000e+00> : vector<4x8x32xf32>
    %36 = tpu.matmul %35, %8, %cst_19 {dimension_numbers = #tpu.dot_dimension_numbers<[2], [1], [1], [2], [0, 0, 0, 1, 1, 2], [0], [0]>} : vector<4x8x8xf32>, vector<4x8x32xf32>, vector<4x8x32xf32> -> vector<4x8x32xf32>
    "tpu.trace_stop"() : () -> ()
    %cst_20 = arith.constant dense<0.000000e+00> : vector<8x32xf32>
    %37 = vector.multi_reduction <add>, %36, %cst_20 [0] : vector<4x8x32xf32> to vector<8x32xf32>
    %38 = vector.broadcast %9 : vector<1x32xf32> to vector<8x32xf32>
    %39 = arith.addf %37, %38 : vector<8x32xf32>
    %c0_21 = arith.constant 0 : index
    %c0_22 = arith.constant 0 : index
    %c0_23 = arith.constant 0 : index
    %40 = vector.load %arg6[%c0_21, %c0_22, %c0_23] : memref<1x8x32xf32, #tpu.memory_space<vmem>>, vector<1x8x32xf32>
    %41 = vector.shape_cast %40 : vector<1x8x32xf32> to vector<8x32xf32>
    %42 = vector.shape_cast %39 : vector<8x32xf32> to vector<1x8x32xf32>
    tpu.vector_store %arg6[%c0_21, %c0_22, %c0_23], %42 {strides = array<i32>} : memref<1x8x32xf32, #tpu.memory_space<vmem>>, vector<1x8x32xf32>,
    return
  }
  func.func @transform_0(%arg0: i32) -> (i32, i32, i32) {
    %c0_i32 = arith.constant 0 : i32
    %c0_i32_0 = arith.constant 0 : i32
    %c0_i32_1 = arith.constant 0 : i32
    return %arg0, %c0_i32, %c0_i32_0 : i32, i32, i32
  }
  func.func @transform_1(%arg0: i32) -> (i32, i32, i32) {
    %c0_i32 = arith.constant 0 : i32
    %c0_i32_0 = arith.constant 0 : i32
    %c0_i32_1 = arith.constant 0 : i32
    %c0_i32_2 = arith.constant 0 : i32
    return %c0_i32, %c0_i32_0, %c0_i32_1 : i32, i32, i32
  }
  func.func @transform_2(%arg0: i32) -> (i32, i32, i32) {
    %c0_i32 = arith.constant 0 : i32
    %c0_i32_0 = arith.constant 0 : i32
    %c0_i32_1 = arith.constant 0 : i32
    %c0_i32_2 = arith.constant 0 : i32
    return %c0_i32, %c0_i32_0, %c0_i32_1 : i32, i32, i32
  }
  func.func @transform_3(%arg0: i32) -> (i32, i32, i32) {
    %c0_i32 = arith.constant 0 : i32
    %c0_i32_0 = arith.constant 0 : i32
    %c0_i32_1 = arith.constant 0 : i32
    %c0_i32_2 = arith.constant 0 : i32
    return %c0_i32, %c0_i32_0, %c0_i32_1 : i32, i32, i32
  }
  func.func @transform_4(%arg0: i32) -> (i32, i32) {
    %c0_i32 = arith.constant 0 : i32
    %c0_i32_0 = arith.constant 0 : i32
    %c0_i32_1 = arith.constant 0 : i32
    return %c0_i32, %c0_i32_0 : i32, i32
  }
  func.func @transform_5(%arg0: i32) -> (i32, i32, i32) {
    %c0_i32 = arith.constant 0 : i32
    %c0_i32_0 = arith.constant 0 : i32
    %c0_i32_1 = arith.constant 0 : i32
    return %arg0, %c0_i32, %c0_i32_0 : i32, i32, i32
  }
}

</mosaic_0001>

<llo_original>
// kernel: tpu_custom_call.1
$region0: #{tpu_custom_call.1}
  #allocation0 [shape = 'u32[]', space=smem, size = 0x4, offset = 0x4, fixed_abs, tag = 'smem constant byte address 0x4 - core index']
  #allocation1 [shape = 'u32[144,128]{1,0:T(1,128)}', space=vmem, size = 0x12000, scoped, tag = 'internal scratch']
  %s0 = inlined_call_operand.vmem [shape: f32[2,8,32], index: 0, kind: input, shape index: {}]
  %s1 = inlined_call_operand.vmem [shape: f32[4,32,24], index: 1, kind: input, shape index: {}]
  %s2 = inlined_call_operand.vmem [shape: f32[4,1,24], index: 2, kind: input, shape index: {}]
  %s3 = inlined_call_operand.vmem [shape: f32[4,8,32], index: 3, kind: input, shape index: {}]
  %s4 = inlined_call_operand.vmem [shape: f32[1,32], index: 4, kind: input, shape index: {}]
  %s5 = inlined_call_operand.hbm [shape: f32[2,8,32], index: 5, kind: output, shape index: {}]
  %s6 = sld [smem:[#allocation0]]
  $region53: #{tpu_custom_call.1} parent=0
    _
  %s8 = ssub.s32 1, %s6
  %s9 = scalar_select 0, %s8, %s6
  $region1: #{tpu_custom_call.1} parent=0
    #allocation2 [shape = 'u8[8192]{0}', space=vmem, size = 0x2000, scoped, tag = 'output window, operand 0']
    #allocation3 [shape = 's32[2]{0}', space=sflag, size = 0x8, scoped, tag = 'scoped memory for tpu_custom_call.1']
    %10 = vsyncpa [#allocation3], 0
    %s11 = scalar_lea.sflag [#allocation3], 1
    %12 = vsyncpa %s11, 0
    loop: start=0, step=1, limit=4
    $region2: #{tpu_custom_call.1} parent=1 // loop_pre_header
      _
    $region3: #{tpu_custom_call.1} parent=1 // loop_header
      %s14 = sphi 0, %s18
      %p15 = scmp.ge.s32.totalorder %s14, 4
      %s24 = sphi 0, %s26
      %s27 = sphi 0, %s24
      %s28 = sphi 0, %s27
      %s44 = sphi 0, %s28
      %s48 = sphi 0, %s48
      %s50 = sphi 0, %s48
      %s51 = sphi 0, %s50
      %s65 = sphi 0, %s51
      %s69 = sphi 0, %s69
      %s71 = sphi 0, %s69
      %s72 = sphi 0, %s71
      %s86 = sphi 0, %s72
      %s90 = sphi 0, %s90
      %s92 = sphi 0, %s90
      %s93 = sphi 0, %s92
      %s107 = sphi 0, %s93
      %s111 = sphi 0, %s111
      %s113 = sphi 0, %s111
      %s114 = sphi 0, %s113
      %s128 = sphi 0, %s114
      %s134 = sphi 0, %s136
      %s137 = sphi 0, %s134
      %s138 = sphi 0, %s137
      %s154 = sphi 0, %s138
    $region4: #{tpu_custom_call.1} parent=1 // loop_header_branch
      %17 = sbr.rel (%p15) target = $region8
    $region5: #{tpu_custom_call.1} parent=1 // loop_body
      %s19 = ssub.s32 %s14, 1
      %s20 = ssub.s32 %s14, 2
      %s21 = sadd.s32 %s14, 1
      %s22 = ssub.s32 %s14, %s21
      %p23 = scmp.eq.s32.totalorder %s22, 0
      %s25 = sadd.s32 %s24, 1
      %s26 = scalar_select %p23, %s24, %s25
      %p29 = pneg %p23
      %p30 = scmp.eq.s32.totalorder %s14, 1
      %p31 = por %p29, %p30
      %p32 = scmp.ne.s32.totalorder %s24, %s27
      %p33 = scmp.eq.s32.totalorder %s14, 0
      %p34 = por %p32, %p33
      %p35 = scmp.ne.s32.totalorder %s24, %s27
      %p36 = scmp.eq.s32.totalorder %s19, 1
      %p37 = por %p35, %p36
      %p38 = scmp.ne.s32.totalorder %s27, %s28
      %p39 = scmp.eq.s32.totalorder %s19, 0
      %p40 = por %p38, %p39
      %p41 = scmp.ne.s32.totalorder %s27, %s28
      %p42 = scmp.eq.s32.totalorder %s20, 1
      %p43 = por %p41, %p42
      %p45 = scmp.ne.s32.totalorder %s28, %s44
      %p46 = scmp.eq.s32.totalorder %s20, 0
      %p47 = por %p45, %p46
      %s49 = sadd.s32 %s48, 1
      %p52 = scmp.eq.s32.totalorder %s14, 1
      %p53 = scmp.ne.s32.totalorder %s48, %s50
      %p54 = scmp.eq.s32.totalorder %s14, 0
      %p55 = por %p53, %p54
      %p56 = scmp.ne.s32.totalorder %s48, %s50
      %p57 = scmp.eq.s32.totalorder %s19, 1
      %p58 = por %p56, %p57
      %p59 = scmp.ne.s32.totalorder %s50, %s51
      %p60 = scmp.eq.s32.totalorder %s19, 0
      %p61 = por %p59, %p60
      %p62 = scmp.ne.s32.totalorder %s50, %s51
      %p63 = scmp.eq.s32.totalorder %s20, 1
      %p64 = por %p62, %p63
      %p66 = scmp.ne.s32.totalorder %s51, %s65
      %p67 = scmp.eq.s32.totalorder %s20, 0
      %p68 = por %p66, %p67
      %s70 = sadd.s32 %s69, 1
      %p73 = scmp.eq.s32.totalorder %s14, 1
      %p74 = scmp.ne.s32.totalorder %s69, %s71
      %p75 = scmp.eq.s32.totalorder %s14, 0
      %p76 = por %p74, %p75
      %p77 = scmp.ne.s32.totalorder %s69, %s71
      %p78 = scmp.eq.s32.totalorder %s19, 1
      %p79 = por %p77, %p78
      %p80 = scmp.ne.s32.totalorder %s71, %s72
      %p81 = scmp.eq.s32.totalorder %s19, 0
      %p82 = por %p80, %p81
      %p83 = scmp.ne.s32.totalorder %s71, %s72
      %p84 = scmp.eq.s32.totalorder %s20, 1
      %p85 = por %p83, %p84
      %p87 = scmp.ne.s32.totalorder %s72, %s86
      %p88 = scmp.eq.s32.totalorder %s20, 0
      %p89 = por %p87, %p88
      %s91 = sadd.s32 %s90, 1
      %p94 = scmp.eq.s32.totalorder %s14, 1
      %p95 = scmp.ne.s32.totalorder %s90, %s92
      %p96 = scmp.eq.s32.totalorder %s14, 0
      %p97 = por %p95, %p96
      %p98 = scmp.ne.s32.totalorder %s90, %s92
      %p99 = scmp.eq.s32.totalorder %s19, 1
      %p100 = por %p98, %p99
      %p101 = scmp.ne.s32.totalorder %s92, %s93
      %p102 = scmp.eq.s32.totalorder %s19, 0
      %p103 = por %p101, %p102
      %p104 = scmp.ne.s32.totalorder %s92, %s93
      %p105 = scmp.eq.s32.totalorder %s20, 1
      %p106 = por %p104, %p105
      %p108 = scmp.ne.s32.totalorder %s93, %s107
      %p109 = scmp.eq.s32.totalorder %s20, 0
      %p110 = por %p108, %p109
      %s112 = sadd.s32 %s111, 1
      %p115 = scmp.eq.s32.totalorder %s14, 1
      %p116 = scmp.ne.s32.totalorder %s111, %s113
      %p117 = scmp.eq.s32.totalorder %s14, 0
      %p118 = por %p116, %p117
      %p119 = scmp.ne.s32.totalorder %s111, %s113
      %p120 = scmp.eq.s32.totalorder %s19, 1
      %p121 = por %p119, %p120
      %p122 = scmp.ne.s32.totalorder %s113, %s114
      %p123 = scmp.eq.s32.totalorder %s19, 0
      %p124 = por %p122, %p123
      %p125 = scmp.ne.s32.totalorder %s113, %s114
      %p126 = scmp.eq.s32.totalorder %s20, 1
      %p127 = por %p125, %p126
      %p129 = scmp.ne.s32.totalorder %s114, %s128
      %p130 = scmp.eq.s32.totalorder %s20, 0
      %p131 = por %p129, %p130
      %s132 = ssub.s32 %s14, %s21
      %p133 = scmp.eq.s32.totalorder %s132, 0
      %s135 = sadd.s32 %s134, 1
      %s136 = scalar_select %p133, %s134, %s135
      %p139 = pneg %p133
      %p140 = scmp.eq.s32.totalorder %s14, 1
      %p141 = por %p139, %p140
      %p142 = scmp.ne.s32.totalorder %s134, %s137
      %p143 = scmp.eq.s32.totalorder %s14, 0
      %p144 = por %p142, %p143
      %p145 = scmp.ne.s32.totalorder %s134, %s137
      %p146 = scmp.eq.s32.totalorder %s19, 1
      %p147 = por %p145, %p146
      %p148 = scmp.ne.s32.totalorder %s137, %s138
      %p149 = scmp.eq.s32.totalorder %s19, 0
      %p150 = por %p148, %p149
      %p151 = scmp.ne.s32.totalorder %s137, %s138
      %p152 = scmp.eq.s32.totalorder %s20, 1
      %p153 = por %p151, %p152
      %p155 = scmp.ne.s32.totalorder %s138, %s154
      %p156 = scmp.eq.s32.totalorder %s20, 0
      %p157 = por %p155, %p156
      %p158 = scmp.le.s32.totalorder 1, %s14
      %p159 = scmp.lt.s32.totalorder %s14, 3
      %p160 = pnand %p158, %p159
      %p161 = pneg %p160
      // Predicated region
      $region9: #{tpu_custom_call.1} parent=5 // pred_check
        _
      $region10: #{tpu_custom_call.1} parent=5 // pred_check_branch
        %163 = sbr.rel (%p160) target = $region12
      $region11: #{tpu_custom_call.1} parent=5 // pred_region
        %s164 = ssub.s32 %s14, 1
        // Predicated region
        $region13: #{tpu_custom_call.1} parent=11 // pred_check
          %p165 = pneg %p61
        $region14: #{tpu_custom_call.1} parent=11 // pred_check_branch
          %167 = sbr.rel (%p165) target = $region16
        $region15: #{tpu_custom_call.1} parent=11 // pred_region
          _
        $region16: #{tpu_custom_call.1} parent=11 // pred_fallthru
          _
        // Predicated region
        $region17: #{tpu_custom_call.1} parent=11 // pred_check
          %p168 = pneg %p82
        $region18: #{tpu_custom_call.1} parent=11 // pred_check_branch
          %170 = sbr.rel (%p168) target = $region20
        $region19: #{tpu_custom_call.1} parent=11 // pred_region
          _
        $region20: #{tpu_custom_call.1} parent=11 // pred_fallthru
          _
        // Predicated region
        $region21: #{tpu_custom_call.1} parent=11 // pred_check
          %p171 = pneg %p103
        $region22: #{tpu_custom_call.1} parent=11 // pred_check_branch
          %173 = sbr.rel (%p171) target = $region24
        $region23: #{tpu_custom_call.1} parent=11 // pred_region
          _
        $region24: #{tpu_custom_call.1} parent=11 // pred_fallthru
          _
        // Predicated region
        $region25: #{tpu_custom_call.1} parent=11 // pred_check
          %p174 = pneg %p124
        $region26: #{tpu_custom_call.1} parent=11 // pred_check_branch
          %176 = sbr.rel (%p174) target = $region28
        $region27: #{tpu_custom_call.1} parent=11 // pred_region
          _
        $region28: #{tpu_custom_call.1} parent=11 // pred_fallthru
          _
      $region12: #{tpu_custom_call.1} parent=5 // pred_fallthru
        _
      %p177 = scmp.lt.s32.totalorder %s14, 2
      // Predicated region
      $region29: #{tpu_custom_call.1} parent=5 // pred_check
        %p178 = pneg %p177
      $region30: #{tpu_custom_call.1} parent=5 // pred_check_branch
        %180 = sbr.rel (%p178) target = $region32
      $region31: #{tpu_custom_call.1} parent=5 // pred_region
        // Predicated region
        $region33: #{tpu_custom_call.1} parent=31 // pred_check
          %p181 = pneg %p34
        $region34: #{tpu_custom_call.1} parent=31 // pred_check_branch
          %183 = sbr.rel (%p181) target = $region36
        $region35: #{tpu_custom_call.1} parent=31 // pred_region
          %p184 = scmp.lt.s32.totalorder %s14, 1
          %s185 = scalar_select %p184, %s14, 1
          %s186 = smul.addr %s185, 8
          %s187 = scalar_lea.vmem %s0, %s186
        $region36: #{tpu_custom_call.1} parent=31 // pred_fallthru
          _
      $region32: #{tpu_custom_call.1} parent=5 // pred_fallthru
        _
      %p188 = scmp.le.s32.totalorder 1, %s14
      %p189 = scmp.lt.s32.totalorder %s14, 3
      %p190 = pnand %p188, %p189
      %p191 = pneg %p190
      // Predicated region
      $region37: #{tpu_custom_call.1} parent=5 // pred_check
        _
      $region38: #{tpu_custom_call.1} parent=5 // pred_check_branch
        %193 = sbr.rel (%p190) target = $region40
      $region39: #{tpu_custom_call.1} parent=5 // pred_region
        %s194 = ssub.s32 %s14, 1
        %p195 = scmp.lt.s32.totalorder %s19, 1
        %s196 = scalar_select %p195, %s19, 1
        %s197 = smul.addr %s196, 8
        %s198 = scalar_lea.vmem %s0, %s197
        %p199 = pneg %p40
        %p200 = pneg %p37
        %p201 = pneg %p61
        %p202 = pneg %p58
        %p203 = pneg %p82
        %p204 = pneg %p79
        %p205 = pneg %p103
        %p206 = pneg %p100
        %p207 = pneg %p124
        %p208 = pneg %p121
        %p209 = pneg %p150
        %p210 = pneg %p147
        %s211 = sand.u32 %s137, 1
        %s212 = scalar_lea.sflag [#allocation3], %s211
        %s213 = sand.u32 %s137, 1
        %s214 = smul.addr %s213, 8
        %s215 = scalar_lea.vmem [#allocation2], %s214
        %p216 = scmp.lt.s32.totalorder %s19, 1
        %s217 = scalar_select %p216, %s19, 1
        %s218 = smul.addr %s217, 8
        %s219 = scalar_lea.vmem %s0, %s218
        %v220 = vlaneseq
        %v221 = vshrl.u32 %v220, 7
        %v222 = vlaneseq
        %v223 = vand.u32 %v222, 127
        %vm224 = vcmp.le.s32.totalorder %v223, %v221
        %v225 = vsel %vm224, 0.0, -1e+30
        %v226 = vld [vmem:[%s1] sm:$0xff]
        %v227 = vld [vmem:[%s1 + $0x8] sm:$0xff]
        %v228 = vld [vmem:[%s1 + $0x10] sm:$0xff]
        %v229 = vld [vmem:[%s1 + $0x18] sm:$0xff]
        %v230 = vld [vmem:[%s1 + $0x20] sm:$0xff]
        %v231 = vld [vmem:[%s1 + $0x28] sm:$0xff]
        %v232 = vld [vmem:[%s1 + $0x30] sm:$0xff]
        %v233 = vld [vmem:[%s1 + $0x38] sm:$0xff]
        %v234 = vld [vmem:[%s1 + $0x40] sm:$0xff]
        %v235 = vld [vmem:[%s1 + $0x48] sm:$0xff]
        %v236 = vld [vmem:[%s1 + $0x50] sm:$0xff]
        %v237 = vld [vmem:[%s1 + $0x58] sm:$0xff]
        %v238 = vld [vmem:[%s1 + $0x60] sm:$0xff]
        %v239 = vld [vmem:[%s1 + $0x68] sm:$0xff]
        %v240 = vld [vmem:[%s1 + $0x70] sm:$0xff]
        %v241 = vld [vmem:[%s1 + $0x78] sm:$0xff]
        %v242 = vld [vmem:[%s2] sm:$0x1]
        %v243 = vld [vmem:[%s2 + $0x1] sm:$0x1]
        %v244 = vld [vmem:[%s2 + $0x2] sm:$0x1]
        %v245 = vld [vmem:[%s2 + $0x3] sm:$0x1]
        %v246 = vld [vmem:[%s3] sm:$0xff]
        %v247 = vld [vmem:[%s3 + $0x8] sm:$0xff]
        %v248 = vld [vmem:[%s3 + $0x10] sm:$0xff]
        %v249 = vld [vmem:[%s3 + $0x18] sm:$0xff]
        %v250 = vld [vmem:[%s4] sm:$0x1]
        %v251 = vld [vmem:[%s219] sm:$0xff]
        %v256 = vlaneseq
        %v257 = vshrl.u32 %v256, 7
        %v258 = vsub.s32 0, %v257
        %v259 = vrot.slane %v242, %v258
        %v260 = vlaneseq
        %v261 = vshrl.u32 %v260, 7
        %v262 = vsub.s32 0, %v261
        %v263 = vrot.slane %v243, %v262
        %v264 = vlaneseq
        %v265 = vshrl.u32 %v264, 7
        %v266 = vsub.s32 0, %v265
        %v267 = vrot.slane %v244, %v266
        %v268 = vlaneseq
        %v269 = vshrl.u32 %v268, 7
        %v270 = vsub.s32 0, %v269
        %v271 = vrot.slane %v245, %v270
        %vm276 = vcmask 261120
        %v278 = vsel %vm276, %v251, 0
        %280 = vmatprep.subr.mxu0 0.0
        %281 = vmatpush1.msra.mxu0 0.0
        %282 = vmatprep.subr.mxu0 0.0
        %283 = vmatpush1.msra.mxu0 0.0
        %284 = vmatprep.subr.mxu0 0.0
        %285 = vmatpush1.msra.mxu0 0.0
        %286 = vmatprep.subr.mxu0 0.0
        %287 = vmatpush1.msra.mxu0 0.0
        %288 = vmatprep.subr.mxu0 0.0
        %289 = vmatpush1.msra.mxu0 0.0
        %290 = vmatprep.subr.mxu0 0.0
        %291 = vmatpush1.msra.mxu0 0.0
        %292 = vmatprep.subr.mxu0 0.0
        %293 = vmatpush1.msra.mxu0 0.0
        %294 = vmatprep.subr.mxu0 0.0
        %295 = vmatpush1.msra.mxu0 0.0
        %296 = vmatprep.subr.mxu0 0.0
        %297 = vmatpush1.msra.mxu0 0.0
        %298 = vmatprep.subr.mxu0 0.0
        %299 = vmatpush1.msra.mxu0 0.0
        %300 = vmatprep.subr.mxu0 0.0
        %301 = vmatpush1.msra.mxu0 0.0
        %302 = vmatprep.subr.mxu0 0.0
        %303 = vmatpush1.msra.mxu0 0.0
        %304 = vmatprep.subr.mxu0 0.0
        %305 = vmatpush1.msra.mxu0 %v229
        %306 = vmatprep.subr.mxu0 0.0
        %307 = vmatpush1.msra.mxu0 %v228
        %308 = vmatprep.subr.mxu0 0.0
        %309 = vmatpush1.msra.mxu0 %v227
        %310 = vmatprep.subr.mxu0 0.0
        %311 = vmatpush1.msra.mxu0 %v226
        %312 = vmatprep.subr.mxu0 0.0
        %313 = vmatpush2.msra.mxu0 0.0
        %314 = vmatprep.subr.mxu0 0.0
        %315 = vmatpush2.msra.mxu0 0.0
        %316 = vmatprep.subr.mxu0 0.0
        %317 = vmatpush2.msra.mxu0 0.0
        %318 = vmatprep.subr.mxu0 0.0
        %319 = vmatpush2.msra.mxu0 0.0
        %320 = vmatprep.subr.mxu0 0.0
        %321 = vmatpush2.msra.mxu0 0.0
        %322 = vmatprep.subr.mxu0 0.0
        %323 = vmatpush2.msra.mxu0 0.0
        %324 = vmatprep.subr.mxu0 0.0
        %325 = vmatpush2.msra.mxu0 0.0
        %326 = vmatprep.subr.mxu0 0.0
        %327 = vmatpush2.msra.mxu0 0.0
        %328 = vmatprep.subr.mxu0 0.0
        %329 = vmatpush2.msra.mxu0 0.0
        %330 = vmatprep.subr.mxu0 0.0
        %331 = vmatpush2.msra.mxu0 0.0
        %332 = vmatprep.subr.mxu0 0.0
        %333 = vmatpush2.msra.mxu0 0.0
        %334 = vmatprep.subr.mxu0 0.0
        %335 = vmatpush2.msra.mxu0 0.0
        %336 = vmatprep.subr.mxu0 0.0
        %337 = vmatpush2.msra.mxu0 0.0
        %338 = vmatprep.subr.mxu0 0.0
        %339 = vmatpush2.msra.mxu0 0.0
        %340 = vmatprep.subr.mxu0 0.0
        %341 = vmatpush2.msra.mxu0 0.0
        %342 = vmatprep.subr.mxu0 0.0
        %343 = vmatpush2.msra.mxu0 0.0
        %344 = vmatprep.mubr.f32.mxu0 0.0
        %345 = vmatmul.mubr.f32.gmra.mxu0 %v278
        %v346 = vpop.f32.mrf.mxu0
        %v347 = vadd.f32 %v259, %v346
        %v348 = vpop.f32.mrf.mxu0
        %349 = vdwg.mxu0
        %350 = vmatprep.subr.mxu0 0.0
        %351 = vmatpush1.msra.mxu0 0.0
        %352 = vmatprep.subr.mxu0 0.0
        %353 = vmatpush1.msra.mxu0 0.0
        %354 = vmatprep.subr.mxu0 0.0
        %355 = vmatpush1.msra.mxu0 0.0
        %356 = vmatprep.subr.mxu0 0.0
        %357 = vmatpush1.msra.mxu0 0.0
        %358 = vmatprep.subr.mxu0 0.0
        %359 = vmatpush1.msra.mxu0 0.0
        %360 = vmatprep.subr.mxu0 0.0
        %361 = vmatpush1.msra.mxu0 0.0
        %362 = vmatprep.subr.mxu0 0.0
        %363 = vmatpush1.msra.mxu0 0.0
        %364 = vmatprep.subr.mxu0 0.0
        %365 = vmatpush1.msra.mxu0 0.0
        %366 = vmatprep.subr.mxu0 0.0
        %367 = vmatpush1.msra.mxu0 0.0
        %368 = vmatprep.subr.mxu0 0.0
        %369 = vmatpush1.msra.mxu0 0.0
        %370 = vmatprep.subr.mxu0 0.0
        %371 = vmatpush1.msra.mxu0 0.0
        %372 = vmatprep.subr.mxu0 0.0
        %373 = vmatpush1.msra.mxu0 0.0
        %374 = vmatprep.subr.mxu0 0.0
        %375 = vmatpush1.msra.mxu0 %v233
        %376 = vmatprep.subr.mxu0 0.0
        %377 = vmatpush1.msra.mxu0 %v232
        %378 = vmatprep.subr.mxu0 0.0
        %379 = vmatpush1.msra.mxu0 %v231
        %380 = vmatprep.subr.mxu0 0.0
        %381 = vmatpush1.msra.mxu0 %v230
        %382 = vmatprep.subr.mxu0 0.0
        %383 = vmatpush2.msra.mxu0 0.0
        %384 = vmatprep.subr.mxu0 0.0
        %385 = vmatpush2.msra.mxu0 0.0
        %386 = vmatprep.subr.mxu0 0.0
        %387 = vmatpush2.msra.mxu0 0.0
        %388 = vmatprep.subr.mxu0 0.0
        %389 = vmatpush2.msra.mxu0 0.0
        %390 = vmatprep.subr.mxu0 0.0
        %391 = vmatpush2.msra.mxu0 0.0
        %392 = vmatprep.subr.mxu0 0.0
        %393 = vmatpush2.msra.mxu0 0.0
        %394 = vmatprep.subr.mxu0 0.0
        %395 = vmatpush2.msra.mxu0 0.0
        %396 = vmatprep.subr.mxu0 0.0
        %397 = vmatpush2.msra.mxu0 0.0
        %398 = vmatprep.subr.mxu0 0.0
        %399 = vmatpush2.msra.mxu0 0.0
        %400 = vmatprep.subr.mxu0 0.0
        %401 = vmatpush2.msra.mxu0 0.0
        %402 = vmatprep.subr.mxu0 0.0
        %403 = vmatpush2.msra.mxu0 0.0
        %404 = vmatprep.subr.mxu0 0.0
        %405 = vmatpush2.msra.mxu0 0.0
        %406 = vmatprep.subr.mxu0 0.0
        %407 = vmatpush2.msra.mxu0 0.0
        %408 = vmatprep.subr.mxu0 0.0
        %409 = vmatpush2.msra.mxu0 0.0
        %410 = vmatprep.subr.mxu0 0.0
        %411 = vmatpush2.msra.mxu0 0.0
        %412 = vmatprep.subr.mxu0 0.0
        %413 = vmatpush2.msra.mxu0 0.0
        %414 = vmatprep.mubr.f32.mxu0 0.0
        %415 = vmatmul.mubr.f32.gmra.mxu0 %v278
        %v416 = vpop.f32.mrf.mxu0
        %v417 = vadd.f32 %v263, %v416
        %v418 = vpop.f32.mrf.mxu0
        %419 = vdwg.mxu0
        %420 = vmatprep.subr.mxu0 0.0
        %421 = vmatpush1.msra.mxu0 0.0
        %422 = vmatprep.subr.mxu0 0.0
        %423 = vmatpush1.msra.mxu0 0.0
        %424 = vmatprep.subr.mxu0 0.0
        %425 = vmatpush1.msra.mxu0 0.0
        %426 = vmatprep.subr.mxu0 0.0
        %427 = vmatpush1.msra.mxu0 0.0
        %428 = vmatprep.subr.mxu0 0.0
        %429 = vmatpush1.msra.mxu0 0.0
        %430 = vmatprep.subr.mxu0 0.0
        %431 = vmatpush1.msra.mxu0 0.0
        %432 = vmatprep.subr.mxu0 0.0
        %433 = vmatpush1.msra.mxu0 0.0
        %434 = vmatprep.subr.mxu0 0.0
        %435 = vmatpush1.msra.mxu0 0.0
        %436 = vmatprep.subr.mxu0 0.0
        %437 = vmatpush1.msra.mxu0 0.0
        %438 = vmatprep.subr.mxu0 0.0
        %439 = vmatpush1.msra.mxu0 0.0
        %440 = vmatprep.subr.mxu0 0.0
        %441 = vmatpush1.msra.mxu0 0.0
        %442 = vmatprep.subr.mxu0 0.0
        %443 = vmatpush1.msra.mxu0 0.0
        %444 = vmatprep.subr.mxu0 0.0
        %445 = vmatpush1.msra.mxu0 %v237
        %446 = vmatprep.subr.mxu0 0.0
        %447 = vmatpush1.msra.mxu0 %v236
        %448 = vmatprep.subr.mxu0 0.0
        %449 = vmatpush1.msra.mxu0 %v235
        %450 = vmatprep.subr.mxu0 0.0
        %451 = vmatpush1.msra.mxu0 %v234
        %452 = vmatprep.subr.mxu0 0.0
        %453 = vmatpush2.msra.mxu0 0.0
        %454 = vmatprep.subr.mxu0 0.0
        %455 = vmatpush2.msra.mxu0 0.0
        %456 = vmatprep.subr.mxu0 0.0
        %457 = vmatpush2.msra.mxu0 0.0
        %458 = vmatprep.subr.mxu0 0.0
        %459 = vmatpush2.msra.mxu0 0.0
        %460 = vmatprep.subr.mxu0 0.0
        %461 = vmatpush2.msra.mxu0 0.0
        %462 = vmatprep.subr.mxu0 0.0
        %463 = vmatpush2.msra.mxu0 0.0
        %464 = vmatprep.subr.mxu0 0.0
        %465 = vmatpush2.msra.mxu0 0.0
        %466 = vmatprep.subr.mxu0 0.0
        %467 = vmatpush2.msra.mxu0 0.0
        %468 = vmatprep.subr.mxu0 0.0
        %469 = vmatpush2.msra.mxu0 0.0
        %470 = vmatprep.subr.mxu0 0.0
        %471 = vmatpush2.msra.mxu0 0.0
        %472 = vmatprep.subr.mxu0 0.0
        %473 = vmatpush2.msra.mxu0 0.0
        %474 = vmatprep.subr.mxu0 0.0
        %475 = vmatpush2.msra.mxu0 0.0
        %476 = vmatprep.subr.mxu0 0.0
        %477 = vmatpush2.msra.mxu0 0.0
        %478 = vmatprep.subr.mxu0 0.0
        %479 = vmatpush2.msra.mxu0 0.0
        %480 = vmatprep.subr.mxu0 0.0
        %481 = vmatpush2.msra.mxu0 0.0
        %482 = vmatprep.subr.mxu0 0.0
        %483 = vmatpush2.msra.mxu0 0.0
        %484 = vmatprep.mubr.f32.mxu0 0.0
        %485 = vmatmul.mubr.f32.gmra.mxu0 %v278
        %v486 = vpop.f32.mrf.mxu0
        %v487 = vadd.f32 %v267, %v486
        %v488 = vpop.f32.mrf.mxu0
        %489 = vdwg.mxu0
        %490 = vmatprep.subr.mxu0 0.0
        %491 = vmatpush1.msra.mxu0 0.0
        %492 = vmatprep.subr.mxu0 0.0
        %493 = vmatpush1.msra.mxu0 0.0
        %494 = vmatprep.subr.mxu0 0.0
        %495 = vmatpush1.msra.mxu0 0.0
        %496 = vmatprep.subr.mxu0 0.0
        %497 = vmatpush1.msra.mxu0 0.0
        %498 = vmatprep.subr.mxu0 0.0
        %499 = vmatpush1.msra.mxu0 0.0
        %500 = vmatprep.subr.mxu0 0.0
        %501 = vmatpush1.msra.mxu0 0.0
        %502 = vmatprep.subr.mxu0 0.0
        %503 = vmatpush1.msra.mxu0 0.0
        %504 = vmatprep.subr.mxu0 0.0
        %505 = vmatpush1.msra.mxu0 0.0
        %506 = vmatprep.subr.mxu0 0.0
        %507 = vmatpush1.msra.mxu0 0.0
        %508 = vmatprep.subr.mxu0 0.0
        %509 = vmatpush1.msra.mxu0 0.0
        %510 = vmatprep.subr.mxu0 0.0
        %511 = vmatpush1.msra.mxu0 0.0
        %512 = vmatprep.subr.mxu0 0.0
        %513 = vmatpush1.msra.mxu0 0.0
        %514 = vmatprep.subr.mxu0 0.0
        %515 = vmatpush1.msra.mxu0 %v241
        %516 = vmatprep.subr.mxu0 0.0
        %517 = vmatpush1.msra.mxu0 %v240
        %518 = vmatprep.subr.mxu0 0.0
        %519 = vmatpush1.msra.mxu0 %v239
        %520 = vmatprep.subr.mxu0 0.0
        %521 = vmatpush1.msra.mxu0 %v238
        %522 = vmatprep.subr.mxu0 0.0
        %523 = vmatpush2.msra.mxu0 0.0
        %524 = vmatprep.subr.mxu0 0.0
        %525 = vmatpush2.msra.mxu0 0.0
        %526 = vmatprep.subr.mxu0 0.0
        %527 = vmatpush2.msra.mxu0 0.0
        %528 = vmatprep.subr.mxu0 0.0
        %529 = vmatpush2.msra.mxu0 0.0
        %530 = vmatprep.subr.mxu0 0.0
        %531 = vmatpush2.msra.mxu0 0.0
        %532 = vmatprep.subr.mxu0 0.0
        %533 = vmatpush2.msra.mxu0 0.0
        %534 = vmatprep.subr.mxu0 0.0
        %535 = vmatpush2.msra.mxu0 0.0
        %536 = vmatprep.subr.mxu0 0.0
        %537 = vmatpush2.msra.mxu0 0.0
        %538 = vmatprep.subr.mxu0 0.0
        %539 = vmatpush2.msra.mxu0 0.0
        %540 = vmatprep.subr.mxu0 0.0
        %541 = vmatpush2.msra.mxu0 0.0
        %542 = vmatprep.subr.mxu0 0.0
        %543 = vmatpush2.msra.mxu0 0.0
        %544 = vmatprep.subr.mxu0 0.0
        %545 = vmatpush2.msra.mxu0 0.0
        %546 = vmatprep.subr.mxu0 0.0
        %547 = vmatpush2.msra.mxu0 0.0
        %548 = vmatprep.subr.mxu0 0.0
        %549 = vmatpush2.msra.mxu0 0.0
        %550 = vmatprep.subr.mxu0 0.0
        %551 = vmatpush2.msra.mxu0 0.0
        %552 = vmatprep.subr.mxu0 0.0
        %553 = vmatpush2.msra.mxu0 0.0
        %554 = vmatprep.mubr.f32.mxu0 0.0
        %555 = vmatmul.mubr.f32.gmra.mxu0 %v278
        %v556 = vpop.f32.mrf.mxu0
        %v557 = vadd.f32 %v271, %v556
        %v558 = vpop.f32.mrf.mxu0
        %559 = vdwg.mxu0
        %561 = vrot.lane.b32.xlu0 %v347, 120
        %v562 = vpop.permute.xlu0 %561
        %vm563 = vcmask 64512
        %v564 = vsel %vm563, %v347, 0
        %v566 = vsel %vm563, %v562, 0
        %568 = vmatprep.subr.mxu0 0.0
        %569 = vmatpush1.xpose.msra.mxu0 0.0
        %570 = vmatprep.subr.mxu0 0.0
        %571 = vmatpush1.xpose.msra.mxu0 0.0
        %572 = vmatprep.subr.mxu0 0.0
        %573 = vmatpush1.xpose.msra.mxu0 0.0
        %574 = vmatprep.subr.mxu0 0.0
        %575 = vmatpush1.xpose.msra.mxu0 0.0
        %576 = vmatprep.subr.mxu0 0.0
        %577 = vmatpush1.xpose.msra.mxu0 0.0
        %578 = vmatprep.subr.mxu0 0.0
        %579 = vmatpush1.xpose.msra.mxu0 0.0
        %580 = vmatprep.subr.mxu0 0.0
        %581 = vmatpush1.xpose.msra.mxu0 0.0
        %582 = vmatprep.subr.mxu0 0.0
        %583 = vmatpush1.xpose.msra.mxu0 0.0
        %584 = vmatprep.subr.mxu0 0.0
        %585 = vmatpush1.xpose.msra.mxu0 0.0
        %586 = vmatprep.subr.mxu0 0.0
        %587 = vmatpush1.xpose.msra.mxu0 0.0
        %588 = vmatprep.subr.mxu0 0.0
        %589 = vmatpush1.xpose.msra.mxu0 0.0
        %590 = vmatprep.subr.mxu0 0.0
        %591 = vmatpush1.xpose.msra.mxu0 0.0
        %592 = vmatprep.subr.mxu0 0.0
        %593 = vmatpush1.xpose.msra.mxu0 0.0
        %594 = vmatprep.subr.mxu0 0.0
        %595 = vmatpush1.xpose.msra.mxu0 0.0
        %596 = vmatprep.subr.mxu0 0.0
        %597 = vmatpush1.xpose.msra.mxu0 0.0
        %598 = vmatprep.subr.mxu0 0.0
        %599 = vmatpush1.xpose.msra.mxu0 %v566
        %600 = vmatprep.subr.mxu0 0.0
        %601 = vmatpush2.xpose.msra.mxu0 0.0
        %602 = vmatprep.subr.mxu0 0.0
        %603 = vmatpush2.xpose.msra.mxu0 0.0
        %604 = vmatprep.subr.mxu0 0.0
        %605 = vmatpush2.xpose.msra.mxu0 0.0
        %606 = vmatprep.subr.mxu0 0.0
        %607 = vmatpush2.xpose.msra.mxu0 0.0
        %608 = vmatprep.subr.mxu0 0.0
        %609 = vmatpush2.xpose.msra.mxu0 0.0
        %610 = vmatprep.subr.mxu0 0.0
        %611 = vmatpush2.xpose.msra.mxu0 0.0
        %612 = vmatprep.subr.mxu0 0.0
        %613 = vmatpush2.xpose.msra.mxu0 0.0
        %614 = vmatprep.subr.mxu0 0.0
        %615 = vmatpush2.xpose.msra.mxu0 0.0
        %616 = vmatprep.subr.mxu0 0.0
        %617 = vmatpush2.xpose.msra.mxu0 0.0
        %618 = vmatprep.subr.mxu0 0.0
        %619 = vmatpush2.xpose.msra.mxu0 0.0
        %620 = vmatprep.subr.mxu0 0.0
        %621 = vmatpush2.xpose.msra.mxu0 0.0
        %622 = vmatprep.subr.mxu0 0.0
        %623 = vmatpush2.xpose.msra.mxu0 0.0
        %624 = vmatprep.subr.mxu0 0.0
        %625 = vmatpush2.xpose.msra.mxu0 0.0
        %626 = vmatprep.subr.mxu0 0.0
        %627 = vmatpush2.xpose.msra.mxu0 0.0
        %628 = vmatprep.subr.mxu0 0.0
        %629 = vmatpush2.xpose.msra.mxu0 0.0
        %630 = vmatprep.subr.mxu0 0.0
        %631 = vmatpush2.xpose.msra.mxu0 0.0
        %632 = vmatprep.mubr.f32.mxu0 0.0
        %633 = vmatmul.mubr.f32.gmra.mxu0 %v564
        %v634 = vpop.f32.mrf.mxu0
        %v635 = vadd.f32 %v225, %v634
        %v636 = vpop.f32.mrf.mxu0
        %637 = vdwg.mxu0
        %639 = vrot.lane.b32.xlu0 %v417, 120
        %v640 = vpop.permute.xlu0 %639
        %v641 = vsel %vm563, %v417, 0
        %v643 = vsel %vm563, %v640, 0
        %645 = vmatprep.subr.mxu0 0.0
        %646 = vmatpush1.xpose.msra.mxu0 0.0
        %647 = vmatprep.subr.mxu0 0.0
        %648 = vmatpush1.xpose.msra.mxu0 0.0
        %649 = vmatprep.subr.mxu0 0.0
        %650 = vmatpush1.xpose.msra.mxu0 0.0
        %651 = vmatprep.subr.mxu0 0.0
        %652 = vmatpush1.xpose.msra.mxu0 0.0
        %653 = vmatprep.subr.mxu0 0.0
        %654 = vmatpush1.xpose.msra.mxu0 0.0
        %655 = vmatprep.subr.mxu0 0.0
        %656 = vmatpush1.xpose.msra.mxu0 0.0
        %657 = vmatprep.subr.mxu0 0.0
        %658 = vmatpush1.xpose.msra.mxu0 0.0
        %659 = vmatprep.subr.mxu0 0.0
        %660 = vmatpush1.xpose.msra.mxu0 0.0
        %661 = vmatprep.subr.mxu0 0.0
        %662 = vmatpush1.xpose.msra.mxu0 0.0
        %663 = vmatprep.subr.mxu0 0.0
        %664 = vmatpush1.xpose.msra.mxu0 0.0
        %665 = vmatprep.subr.mxu0 0.0
        %666 = vmatpush1.xpose.msra.mxu0 0.0
        %667 = vmatprep.subr.mxu0 0.0
        %668 = vmatpush1.xpose.msra.mxu0 0.0
        %669 = vmatprep.subr.mxu0 0.0
        %670 = vmatpush1.xpose.msra.mxu0 0.0
        %671 = vmatprep.subr.mxu0 0.0
        %672 = vmatpush1.xpose.msra.mxu0 0.0
        %673 = vmatprep.subr.mxu0 0.0
        %674 = vmatpush1.xpose.msra.mxu0 0.0
        %675 = vmatprep.subr.mxu0 0.0
        %676 = vmatpush1.xpose.msra.mxu0 %v643
        %677 = vmatprep.subr.mxu0 0.0
        %678 = vmatpush2.xpose.msra.mxu0 0.0
        %679 = vmatprep.subr.mxu0 0.0
        %680 = vmatpush2.xpose.msra.mxu0 0.0
        %681 = vmatprep.subr.mxu0 0.0
        %682 = vmatpush2.xpose.msra.mxu0 0.0
        %683 = vmatprep.subr.mxu0 0.0
        %684 = vmatpush2.xpose.msra.mxu0 0.0
        %685 = vmatprep.subr.mxu0 0.0
        %686 = vmatpush2.xpose.msra.mxu0 0.0
        %687 = vmatprep.subr.mxu0 0.0
        %688 = vmatpush2.xpose.msra.mxu0 0.0
        %689 = vmatprep.subr.mxu0 0.0
        %690 = vmatpush2.xpose.msra.mxu0 0.0
        %691 = vmatprep.subr.mxu0 0.0
        %692 = vmatpush2.xpose.msra.mxu0 0.0
        %693 = vmatprep.subr.mxu0 0.0
        %694 = vmatpush2.xpose.msra.mxu0 0.0
        %695 = vmatprep.subr.mxu0 0.0
        %696 = vmatpush2.xpose.msra.mxu0 0.0
        %697 = vmatprep.subr.mxu0 0.0
        %698 = vmatpush2.xpose.msra.mxu0 0.0
        %699 = vmatprep.subr.mxu0 0.0
        %700 = vmatpush2.xpose.msra.mxu0 0.0
        %701 = vmatprep.subr.mxu0 0.0
        %702 = vmatpush2.xpose.msra.mxu0 0.0
        %703 = vmatprep.subr.mxu0 0.0
        %704 = vmatpush2.xpose.msra.mxu0 0.0
        %705 = vmatprep.subr.mxu0 0.0
        %706 = vmatpush2.xpose.msra.mxu0 0.0
        %707 = vmatprep.subr.mxu0 0.0
        %708 = vmatpush2.xpose.msra.mxu0 0.0
        %709 = vmatprep.mubr.f32.mxu0 0.0
        %710 = vmatmul.mubr.f32.gmra.mxu0 %v641
        %v711 = vpop.f32.mrf.mxu0
        %v712 = vadd.f32 %v225, %v711
        %v713 = vpop.f32.mrf.mxu0
        %714 = vdwg.mxu0
        %716 = vrot.lane.b32.xlu0 %v487, 120
        %v717 = vpop.permute.xlu0 %716
        %v718 = vsel %vm563, %v487, 0
        %v720 = vsel %vm563, %v717, 0
        %722 = vmatprep.subr.mxu0 0.0
        %723 = vmatpush1.xpose.msra.mxu0 0.0
        %724 = vmatprep.subr.mxu0 0.0
        %725 = vmatpush1.xpose.msra.mxu0 0.0
        %726 = vmatprep.subr.mxu0 0.0
        %727 = vmatpush1.xpose.msra.mxu0 0.0
        %728 = vmatprep.subr.mxu0 0.0
        %729 = vmatpush1.xpose.msra.mxu0 0.0
        %730 = vmatprep.subr.mxu0 0.0
        %731 = vmatpush1.xpose.msra.mxu0 0.0
        %732 = vmatprep.subr.mxu0 0.0
        %733 = vmatpush1.xpose.msra.mxu0 0.0
        %734 = vmatprep.subr.mxu0 0.0
        %735 = vmatpush1.xpose.msra.mxu0 0.0
        %736 = vmatprep.subr.mxu0 0.0
        %737 = vmatpush1.xpose.msra.mxu0 0.0
        %738 = vmatprep.subr.mxu0 0.0
        %739 = vmatpush1.xpose.msra.mxu0 0.0
        %740 = vmatprep.subr.mxu0 0.0
        %741 = vmatpush1.xpose.msra.mxu0 0.0
        %742 = vmatprep.subr.mxu0 0.0
        %743 = vmatpush1.xpose.msra.mxu0 0.0
        %744 = vmatprep.subr.mxu0 0.0
        %745 = vmatpush1.xpose.msra.mxu0 0.0
        %746 = vmatprep.subr.mxu0 0.0
        %747 = vmatpush1.xpose.msra.mxu0 0.0
        %748 = vmatprep.subr.mxu0 0.0
        %749 = vmatpush1.xpose.msra.mxu0 0.0
        %750 = vmatprep.subr.mxu0 0.0
        %751 = vmatpush1.xpose.msra.mxu0 0.0
        %752 = vmatprep.subr.mxu0 0.0
        %753 = vmatpush1.xpose.msra.mxu0 %v720
        %754 = vmatprep.subr.mxu0 0.0
        %755 = vmatpush2.xpose.msra.mxu0 0.0
        %756 = vmatprep.subr.mxu0 0.0
        %757 = vmatpush2.xpose.msra.mxu0 0.0
        %758 = vmatprep.subr.mxu0 0.0
        %759 = vmatpush2.xpose.msra.mxu0 0.0
        %760 = vmatprep.subr.mxu0 0.0
        %761 = vmatpush2.xpose.msra.mxu0 0.0
        %762 = vmatprep.subr.mxu0 0.0
        %763 = vmatpush2.xpose.msra.mxu0 0.0
        %764 = vmatprep.subr.mxu0 0.0
        %765 = vmatpush2.xpose.msra.mxu0 0.0
        %766 = vmatprep.subr.mxu0 0.0
        %767 = vmatpush2.xpose.msra.mxu0 0.0
        %768 = vmatprep.subr.mxu0 0.0
        %769 = vmatpush2.xpose.msra.mxu0 0.0
        %770 = vmatprep.subr.mxu0 0.0
        %771 = vmatpush2.xpose.msra.mxu0 0.0
        %772 = vmatprep.subr.mxu0 0.0
        %773 = vmatpush2.xpose.msra.mxu0 0.0
        %774 = vmatprep.subr.mxu0 0.0
        %775 = vmatpush2.xpose.msra.mxu0 0.0
        %776 = vmatprep.subr.mxu0 0.0
        %777 = vmatpush2.xpose.msra.mxu0 0.0
        %778 = vmatprep.subr.mxu0 0.0
        %779 = vmatpush2.xpose.msra.mxu0 0.0
        %780 = vmatprep.subr.mxu0 0.0
        %781 = vmatpush2.xpose.msra.mxu0 0.0
        %782 = vmatprep.subr.mxu0 0.0
        %783 = vmatpush2.xpose.msra.mxu0 0.0
        %784 = vmatprep.subr.mxu0 0.0
        %785 = vmatpush2.xpose.msra.mxu0 0.0
        %786 = vmatprep.mubr.f32.mxu0 0.0
        %787 = vmatmul.mubr.f32.gmra.mxu0 %v718
        %v788 = vpop.f32.mrf.mxu0
        %v789 = vadd.f32 %v225, %v788
        %v790 = vpop.f32.mrf.mxu0
        %791 = vdwg.mxu0
        %793 = vrot.lane.b32.xlu0 %v557, 120
        %v794 = vpop.permute.xlu0 %793
        %v795 = vsel %vm563, %v557, 0
        %v797 = vsel %vm563, %v794, 0
        %799 = vmatprep.subr.mxu0 0.0
        %800 = vmatpush1.xpose.msra.mxu0 0.0
        %801 = vmatprep.subr.mxu0 0.0
        %802 = vmatpush1.xpose.msra.mxu0 0.0
        %803 = vmatprep.subr.mxu0 0.0
        %804 = vmatpush1.xpose.msra.mxu0 0.0
        %805 = vmatprep.subr.mxu0 0.0
        %806 = vmatpush1.xpose.msra.mxu0 0.0
        %807 = vmatprep.subr.mxu0 0.0
        %808 = vmatpush1.xpose.msra.mxu0 0.0
        %809 = vmatprep.subr.mxu0 0.0
        %810 = vmatpush1.xpose.msra.mxu0 0.0
        %811 = vmatprep.subr.mxu0 0.0
        %812 = vmatpush1.xpose.msra.mxu0 0.0
        %813 = vmatprep.subr.mxu0 0.0
        %814 = vmatpush1.xpose.msra.mxu0 0.0
        %815 = vmatprep.subr.mxu0 0.0
        %816 = vmatpush1.xpose.msra.mxu0 0.0
        %817 = vmatprep.subr.mxu0 0.0
        %818 = vmatpush1.xpose.msra.mxu0 0.0
        %819 = vmatprep.subr.mxu0 0.0
        %820 = vmatpush1.xpose.msra.mxu0 0.0
        %821 = vmatprep.subr.mxu0 0.0
        %822 = vmatpush1.xpose.msra.mxu0 0.0
        %823 = vmatprep.subr.mxu0 0.0
        %824 = vmatpush1.xpose.msra.mxu0 0.0
        %825 = vmatprep.subr.mxu0 0.0
        %826 = vmatpush1.xpose.msra.mxu0 0.0
        %827 = vmatprep.subr.mxu0 0.0
        %828 = vmatpush1.xpose.msra.mxu0 0.0
        %829 = vmatprep.subr.mxu0 0.0
        %830 = vmatpush1.xpose.msra.mxu0 %v797
        %831 = vmatprep.subr.mxu0 0.0
        %832 = vmatpush2.xpose.msra.mxu0 0.0
        %833 = vmatprep.subr.mxu0 0.0
        %834 = vmatpush2.xpose.msra.mxu0 0.0
        %835 = vmatprep.subr.mxu0 0.0
        %836 = vmatpush2.xpose.msra.mxu0 0.0
        %837 = vmatprep.subr.mxu0 0.0
        %838 = vmatpush2.xpose.msra.mxu0 0.0
        %839 = vmatprep.subr.mxu0 0.0
        %840 = vmatpush2.xpose.msra.mxu0 0.0
        %841 = vmatprep.subr.mxu0 0.0
        %842 = vmatpush2.xpose.msra.mxu0 0.0
        %843 = vmatprep.subr.mxu0 0.0
        %844 = vmatpush2.xpose.msra.mxu0 0.0
        %845 = vmatprep.subr.mxu0 0.0
        %846 = vmatpush2.xpose.msra.mxu0 0.0
        %847 = vmatprep.subr.mxu0 0.0
        %848 = vmatpush2.xpose.msra.mxu0 0.0
        %849 = vmatprep.subr.mxu0 0.0
        %850 = vmatpush2.xpose.msra.mxu0 0.0
        %851 = vmatprep.subr.mxu0 0.0
        %852 = vmatpush2.xpose.msra.mxu0 0.0
        %853 = vmatprep.subr.mxu0 0.0
        %854 = vmatpush2.xpose.msra.mxu0 0.0
        %855 = vmatprep.subr.mxu0 0.0
        %856 = vmatpush2.xpose.msra.mxu0 0.0
        %857 = vmatprep.subr.mxu0 0.0
        %858 = vmatpush2.xpose.msra.mxu0 0.0
        %859 = vmatprep.subr.mxu0 0.0
        %860 = vmatpush2.xpose.msra.mxu0 0.0
        %861 = vmatprep.subr.mxu0 0.0
        %862 = vmatpush2.xpose.msra.mxu0 0.0
        %863 = vmatprep.mubr.f32.mxu0 0.0
        %864 = vmatmul.mubr.f32.gmra.mxu0 %v795
        %v865 = vpop.f32.mrf.mxu0
        %v866 = vadd.f32 %v225, %v865
        %v867 = vpop.f32.mrf.mxu0
        %868 = vdwg.mxu0
        %v869 = vsel %vm563, %v635, -inf
        %870 = vmax.xlane.f32.xlu0 %v869
        %v871 = vpop.xlane.xlu0 %870
        %v872 = vsel %vm563, %v712, -inf
        %873 = vmax.xlane.f32.xlu0 %v872
        %v874 = vpop.xlane.xlu0 %873
        %v875 = vsel %vm563, %v789, -inf
        %876 = vmax.xlane.f32.xlu0 %v875
        %v877 = vpop.xlane.xlu0 %876
        %v878 = vsel %vm563, %v866, -inf
        %879 = vmax.xlane.f32.xlu0 %v878
        %v880 = vpop.xlane.xlu0 %879
        %v881 = vsub.f32 %v635, %v871
        %v882 = vsub.f32 %v712, %v874
        %v883 = vsub.f32 %v789, %v877
        %v884 = vsub.f32 %v866, %v880
        %v885 = vmul.f32 %v881, 1.442695
        %v886 = vpow.pop %v885
        %v887 = vmul.f32 %v882, 1.442695
        %v888 = vpow.pop %v887
        %v889 = vmul.f32 %v883, 1.442695
        %v890 = vpow.pop %v889
        %v891 = vmul.f32 %v884, 1.442695
        %v892 = vpow.pop %v891
        %v893 = vsel %vm563, %v886, 0.0
        %894 = vadd.xlane.f32.xlu0 %v893
        %v895 = vpop.xlane.xlu0 %894
        %v896 = vsel %vm563, %v888, 0.0
        %897 = vadd.xlane.f32.xlu0 %v896
        %v898 = vpop.xlane.xlu0 %897
        %v899 = vsel %vm563, %v890, 0.0
        %900 = vadd.xlane.f32.xlu0 %v899
        %v901 = vpop.xlane.xlu0 %900
        %v902 = vsel %vm563, %v892, 0.0
        %903 = vadd.xlane.f32.xlu0 %v902
        %v904 = vpop.xlane.xlu0 %903
        %905 = vrot.lane.b32.xlu0 %v347, 112
        %v906 = vpop.permute.xlu0 %905
        %v909 = vsel %vm563, %v886, 0
        %911 = vmatprep.subr.mxu0 0.0
        %912 = vmatpush1.msra.mxu0 0.0
        %913 = vmatprep.subr.mxu0 0.0
        %914 = vmatpush1.msra.mxu0 0.0
        %915 = vmatprep.subr.mxu0 0.0
        %916 = vmatpush1.msra.mxu0 0.0
        %917 = vmatprep.subr.mxu0 0.0
        %918 = vmatpush1.msra.mxu0 0.0
        %919 = vmatprep.subr.mxu0 0.0
        %920 = vmatpush1.msra.mxu0 0.0
        %921 = vmatprep.subr.mxu0 0.0
        %922 = vmatpush1.msra.mxu0 0.0
        %923 = vmatprep.subr.mxu0 0.0
        %924 = vmatpush1.msra.mxu0 0.0
        %925 = vmatprep.subr.mxu0 0.0
        %926 = vmatpush1.msra.mxu0 0.0
        %927 = vmatprep.subr.mxu0 0.0
        %928 = vmatpush1.msra.mxu0 0.0
        %929 = vmatprep.subr.mxu0 0.0
        %930 = vmatpush1.msra.mxu0 0.0
        %931 = vmatprep.subr.mxu0 0.0
        %932 = vmatpush1.msra.mxu0 0.0
        %933 = vmatprep.subr.mxu0 0.0
        %934 = vmatpush1.msra.mxu0 0.0
        %935 = vmatprep.subr.mxu0 0.0
        %936 = vmatpush1.msra.mxu0 0.0
        %937 = vmatprep.subr.mxu0 0.0
        %938 = vmatpush1.msra.mxu0 0.0
        %939 = vmatprep.subr.mxu0 0.0
        %940 = vmatpush1.msra.mxu0 0.0
        %941 = vmatprep.subr.mxu0 0.0
        %942 = vmatpush1.msra.mxu0 %v906
        %943 = vmatprep.subr.mxu0 0.0
        %944 = vmatpush2.msra.mxu0 0.0
        %945 = vmatprep.subr.mxu0 0.0
        %946 = vmatpush2.msra.mxu0 0.0
        %947 = vmatprep.subr.mxu0 0.0
        %948 = vmatpush2.msra.mxu0 0.0
        %949 = vmatprep.subr.mxu0 0.0
        %950 = vmatpush2.msra.mxu0 0.0
        %951 = vmatprep.subr.mxu0 0.0
        %952 = vmatpush2.msra.mxu0 0.0
        %953 = vmatprep.subr.mxu0 0.0
        %954 = vmatpush2.msra.mxu0 0.0
        %955 = vmatprep.subr.mxu0 0.0
        %956 = vmatpush2.msra.mxu0 0.0
        %957 = vmatprep.subr.mxu0 0.0
        %958 = vmatpush2.msra.mxu0 0.0
        %959 = vmatprep.subr.mxu0 0.0
        %960 = vmatpush2.msra.mxu0 0.0
        %961 = vmatprep.subr.mxu0 0.0
        %962 = vmatpush2.msra.mxu0 0.0
        %963 = vmatprep.subr.mxu0 0.0
        %964 = vmatpush2.msra.mxu0 0.0
        %965 = vmatprep.subr.mxu0 0.0
        %966 = vmatpush2.msra.mxu0 0.0
        %967 = vmatprep.subr.mxu0 0.0
        %968 = vmatpush2.msra.mxu0 0.0
        %969 = vmatprep.subr.mxu0 0.0
        %970 = vmatpush2.msra.mxu0 0.0
        %971 = vmatprep.subr.mxu0 0.0
        %972 = vmatpush2.msra.mxu0 0.0
        %973 = vmatprep.subr.mxu0 0.0
        %974 = vmatpush2.msra.mxu0 0.0
        %975 = vmatprep.mubr.f32.mxu0 0.0
        %976 = vmatmul.mubr.f32.gmra.mxu0 %v909
        %v977 = vpop.f32.mrf.mxu0
        %v978 = vadd.f32 0.0, %v977
        %v979 = vpop.f32.mrf.mxu0
        %980 = vdwg.mxu0
        %981 = vrot.lane.b32.xlu0 %v417, 112
        %v982 = vpop.permute.xlu0 %981
        %v985 = vsel %vm563, %v888, 0
        %987 = vmatprep.subr.mxu0 0.0
        %988 = vmatpush1.msra.mxu0 0.0
        %989 = vmatprep.subr.mxu0 0.0
        %990 = vmatpush1.msra.mxu0 0.0
        %991 = vmatprep.subr.mxu0 0.0
        %992 = vmatpush1.msra.mxu0 0.0
        %993 = vmatprep.subr.mxu0 0.0
        %994 = vmatpush1.msra.mxu0 0.0
        %995 = vmatprep.subr.mxu0 0.0
        %996 = vmatpush1.msra.mxu0 0.0
        %997 = vmatprep.subr.mxu0 0.0
        %998 = vmatpush1.msra.mxu0 0.0
        %999 = vmatprep.subr.mxu0 0.0
        %1000 = vmatpush1.msra.mxu0 0.0
        %1001 = vmatprep.subr.mxu0 0.0
        %1002 = vmatpush1.msra.mxu0 0.0
        %1003 = vmatprep.subr.mxu0 0.0
        %1004 = vmatpush1.msra.mxu0 0.0
        %1005 = vmatprep.subr.mxu0 0.0
        %1006 = vmatpush1.msra.mxu0 0.0
        %1007 = vmatprep.subr.mxu0 0.0
        %1008 = vmatpush1.msra.mxu0 0.0
        %1009 = vmatprep.subr.mxu0 0.0
        %1010 = vmatpush1.msra.mxu0 0.0
        %1011 = vmatprep.subr.mxu0 0.0
        %1012 = vmatpush1.msra.mxu0 0.0
        %1013 = vmatprep.subr.mxu0 0.0
        %1014 = vmatpush1.msra.mxu0 0.0
        %1015 = vmatprep.subr.mxu0 0.0
        %1016 = vmatpush1.msra.mxu0 0.0
        %1017 = vmatprep.subr.mxu0 0.0
        %1018 = vmatpush1.msra.mxu0 %v982
        %1019 = vmatprep.subr.mxu0 0.0
        %1020 = vmatpush2.msra.mxu0 0.0
        %1021 = vmatprep.subr.mxu0 0.0
        %1022 = vmatpush2.msra.mxu0 0.0
        %1023 = vmatprep.subr.mxu0 0.0
        %1024 = vmatpush2.msra.mxu0 0.0
        %1025 = vmatprep.subr.mxu0 0.0
        %1026 = vmatpush2.msra.mxu0 0.0
        %1027 = vmatprep.subr.mxu0 0.0
        %1028 = vmatpush2.msra.mxu0 0.0
        %1029 = vmatprep.subr.mxu0 0.0
        %1030 = vmatpush2.msra.mxu0 0.0
        %1031 = vmatprep.subr.mxu0 0.0
        %1032 = vmatpush2.msra.mxu0 0.0
        %1033 = vmatprep.subr.mxu0 0.0
        %1034 = vmatpush2.msra.mxu0 0.0
        %1035 = vmatprep.subr.mxu0 0.0
        %1036 = vmatpush2.msra.mxu0 0.0
        %1037 = vmatprep.subr.mxu0 0.0
        %1038 = vmatpush2.msra.mxu0 0.0
        %1039 = vmatprep.subr.mxu0 0.0
        %1040 = vmatpush2.msra.mxu0 0.0
        %1041 = vmatprep.subr.mxu0 0.0
        %1042 = vmatpush2.msra.mxu0 0.0
        %1043 = vmatprep.subr.mxu0 0.0
        %1044 = vmatpush2.msra.mxu0 0.0
        %1045 = vmatprep.subr.mxu0 0.0
        %1046 = vmatpush2.msra.mxu0 0.0
        %1047 = vmatprep.subr.mxu0 0.0
        %1048 = vmatpush2.msra.mxu0 0.0
        %1049 = vmatprep.subr.mxu0 0.0
        %1050 = vmatpush2.msra.mxu0 0.0
        %1051 = vmatprep.mubr.f32.mxu0 0.0
        %1052 = vmatmul.mubr.f32.gmra.mxu0 %v985
        %v1053 = vpop.f32.mrf.mxu0
        %v1054 = vadd.f32 0.0, %v1053
        %v1055 = vpop.f32.mrf.mxu0
        %1056 = vdwg.mxu0
        %1057 = vrot.lane.b32.xlu0 %v487, 112
        %v1058 = vpop.permute.xlu0 %1057
        %v1061 = vsel %vm563, %v890, 0
        %1063 = vmatprep.subr.mxu0 0.0
        %1064 = vmatpush1.msra.mxu0 0.0
        %1065 = vmatprep.subr.mxu0 0.0
        %1066 = vmatpush1.msra.mxu0 0.0
        %1067 = vmatprep.subr.mxu0 0.0
        %1068 = vmatpush1.msra.mxu0 0.0
        %1069 = vmatprep.subr.mxu0 0.0
        %1070 = vmatpush1.msra.mxu0 0.0
        %1071 = vmatprep.subr.mxu0 0.0
        %1072 = vmatpush1.msra.mxu0 0.0
        %1073 = vmatprep.subr.mxu0 0.0
        %1074 = vmatpush1.msra.mxu0 0.0
        %1075 = vmatprep.subr.mxu0 0.0
        %1076 = vmatpush1.msra.mxu0 0.0
        %1077 = vmatprep.subr.mxu0 0.0
        %1078 = vmatpush1.msra.mxu0 0.0
        %1079 = vmatprep.subr.mxu0 0.0
        %1080 = vmatpush1.msra.mxu0 0.0
        %1081 = vmatprep.subr.mxu0 0.0
        %1082 = vmatpush1.msra.mxu0 0.0
        %1083 = vmatprep.subr.mxu0 0.0
        %1084 = vmatpush1.msra.mxu0 0.0
        %1085 = vmatprep.subr.mxu0 0.0
        %1086 = vmatpush1.msra.mxu0 0.0
        %1087 = vmatprep.subr.mxu0 0.0
        %1088 = vmatpush1.msra.mxu0 0.0
        %1089 = vmatprep.subr.mxu0 0.0
        %1090 = vmatpush1.msra.mxu0 0.0
        %1091 = vmatprep.subr.mxu0 0.0
        %1092 = vmatpush1.msra.mxu0 0.0
        %1093 = vmatprep.subr.mxu0 0.0
        %1094 = vmatpush1.msra.mxu0 %v1058
        %1095 = vmatprep.subr.mxu0 0.0
        %1096 = vmatpush2.msra.mxu0 0.0
        %1097 = vmatprep.subr.mxu0 0.0
        %1098 = vmatpush2.msra.mxu0 0.0
        %1099 = vmatprep.subr.mxu0 0.0
        %1100 = vmatpush2.msra.mxu0 0.0
        %1101 = vmatprep.subr.mxu0 0.0
        %1102 = vmatpush2.msra.mxu0 0.0
        %1103 = vmatprep.subr.mxu0 0.0
        %1104 = vmatpush2.msra.mxu0 0.0
        %1105 = vmatprep.subr.mxu0 0.0
        %1106 = vmatpush2.msra.mxu0 0.0
        %1107 = vmatprep.subr.mxu0 0.0
        %1108 = vmatpush2.msra.mxu0 0.0
        %1109 = vmatprep.subr.mxu0 0.0
        %1110 = vmatpush2.msra.mxu0 0.0
        %1111 = vmatprep.subr.mxu0 0.0
        %1112 = vmatpush2.msra.mxu0 0.0
        %1113 = vmatprep.subr.mxu0 0.0
        %1114 = vmatpush2.msra.mxu0 0.0
        %1115 = vmatprep.subr.mxu0 0.0
        %1116 = vmatpush2.msra.mxu0 0.0
        %1117 = vmatprep.subr.mxu0 0.0
        %1118 = vmatpush2.msra.mxu0 0.0
        %1119 = vmatprep.subr.mxu0 0.0
        %1120 = vmatpush2.msra.mxu0 0.0
        %1121 = vmatprep.subr.mxu0 0.0
        %1122 = vmatpush2.msra.mxu0 0.0
        %1123 = vmatprep.subr.mxu0 0.0
        %1124 = vmatpush2.msra.mxu0 0.0
        %1125 = vmatprep.subr.mxu0 0.0
        %1126 = vmatpush2.msra.mxu0 0.0
        %1127 = vmatprep.mubr.f32.mxu0 0.0
        %1128 = vmatmul.mubr.f32.gmra.mxu0 %v1061
        %v1129 = vpop.f32.mrf.mxu0
        %v1130 = vadd.f32 0.0, %v1129
        %v1131 = vpop.f32.mrf.mxu0
        %1132 = vdwg.mxu0
        %1133 = vrot.lane.b32.xlu0 %v557, 112
        %v1134 = vpop.permute.xlu0 %1133
        %v1137 = vsel %vm563, %v892, 0
        %1139 = vmatprep.subr.mxu0 0.0
        %1140 = vmatpush1.msra.mxu0 0.0
        %1141 = vmatprep.subr.mxu0 0.0
        %1142 = vmatpush1.msra.mxu0 0.0
        %1143 = vmatprep.subr.mxu0 0.0
        %1144 = vmatpush1.msra.mxu0 0.0
        %1145 = vmatprep.subr.mxu0 0.0
        %1146 = vmatpush1.msra.mxu0 0.0
        %1147 = vmatprep.subr.mxu0 0.0
        %1148 = vmatpush1.msra.mxu0 0.0
        %1149 = vmatprep.subr.mxu0 0.0
        %1150 = vmatpush1.msra.mxu0 0.0
        %1151 = vmatprep.subr.mxu0 0.0
        %1152 = vmatpush1.msra.mxu0 0.0
        %1153 = vmatprep.subr.mxu0 0.0
        %1154 = vmatpush1.msra.mxu0 0.0
        %1155 = vmatprep.subr.mxu0 0.0
        %1156 = vmatpush1.msra.mxu0 0.0
        %1157 = vmatprep.subr.mxu0 0.0
        %1158 = vmatpush1.msra.mxu0 0.0
        %1159 = vmatprep.subr.mxu0 0.0
        %1160 = vmatpush1.msra.mxu0 0.0
        %1161 = vmatprep.subr.mxu0 0.0
        %1162 = vmatpush1.msra.mxu0 0.0
        %1163 = vmatprep.subr.mxu0 0.0
        %1164 = vmatpush1.msra.mxu0 0.0
        %1165 = vmatprep.subr.mxu0 0.0
        %1166 = vmatpush1.msra.mxu0 0.0
        %1167 = vmatprep.subr.mxu0 0.0
        %1168 = vmatpush1.msra.mxu0 0.0
        %1169 = vmatprep.subr.mxu0 0.0
        %1170 = vmatpush1.msra.mxu0 %v1134
        %1171 = vmatprep.subr.mxu0 0.0
        %1172 = vmatpush2.msra.mxu0 0.0
        %1173 = vmatprep.subr.mxu0 0.0
        %1174 = vmatpush2.msra.mxu0 0.0
        %1175 = vmatprep.subr.mxu0 0.0
        %1176 = vmatpush2.msra.mxu0 0.0
        %1177 = vmatprep.subr.mxu0 0.0
        %1178 = vmatpush2.msra.mxu0 0.0
        %1179 = vmatprep.subr.mxu0 0.0
        %1180 = vmatpush2.msra.mxu0 0.0
        %1181 = vmatprep.subr.mxu0 0.0
        %1182 = vmatpush2.msra.mxu0 0.0
        %1183 = vmatprep.subr.mxu0 0.0
        %1184 = vmatpush2.msra.mxu0 0.0
        %1185 = vmatprep.subr.mxu0 0.0
        %1186 = vmatpush2.msra.mxu0 0.0
        %1187 = vmatprep.subr.mxu0 0.0
        %1188 = vmatpush2.msra.mxu0 0.0
        %1189 = vmatprep.subr.mxu0 0.0
        %1190 = vmatpush2.msra.mxu0 0.0
        %1191 = vmatprep.subr.mxu0 0.0
        %1192 = vmatpush2.msra.mxu0 0.0
        %1193 = vmatprep.subr.mxu0 0.0
        %1194 = vmatpush2.msra.mxu0 0.0
        %1195 = vmatprep.subr.mxu0 0.0
        %1196 = vmatpush2.msra.mxu0 0.0
        %1197 = vmatprep.subr.mxu0 0.0
        %1198 = vmatpush2.msra.mxu0 0.0
        %1199 = vmatprep.subr.mxu0 0.0
        %1200 = vmatpush2.msra.mxu0 0.0
        %1201 = vmatprep.subr.mxu0 0.0
        %1202 = vmatpush2.msra.mxu0 0.0
        %1203 = vmatprep.mubr.f32.mxu0 0.0
        %1204 = vmatmul.mubr.f32.gmra.mxu0 %v1137
        %v1205 = vpop.f32.mrf.mxu0
        %v1206 = vadd.f32 0.0, %v1205
        %v1207 = vpop.f32.mrf.mxu0
        %1208 = vdwg.mxu0
        %v1209 = vrcp.pop %v895
        %v1210 = vrcp.pop %v898
        %v1211 = vrcp.pop %v901
        %v1212 = vrcp.pop %v904
        %v1213 = vmul.f32 %v978, %v1209
        %v1214 = vmul.f32 %v1054, %v1210
        %v1215 = vmul.f32 %v1130, %v1211
        %v1216 = vmul.f32 %v1206, %v1212
        %v1218 = vsel %vm563, %v1213, 0
        %1220 = vmatprep.subr.mxu0 0.0
        %1221 = vmatpush1.msra.mxu0 0.0
        %1222 = vmatprep.subr.mxu0 0.0
        %1223 = vmatpush1.msra.mxu0 0.0
        %1224 = vmatprep.subr.mxu0 0.0
        %1225 = vmatpush1.msra.mxu0 0.0
        %1226 = vmatprep.subr.mxu0 0.0
        %1227 = vmatpush1.msra.mxu0 0.0
        %1228 = vmatprep.subr.mxu0 0.0
        %1229 = vmatpush1.msra.mxu0 0.0
        %1230 = vmatprep.subr.mxu0 0.0
        %1231 = vmatpush1.msra.mxu0 0.0
        %1232 = vmatprep.subr.mxu0 0.0
        %1233 = vmatpush1.msra.mxu0 0.0
        %1234 = vmatprep.subr.mxu0 0.0
        %1235 = vmatpush1.msra.mxu0 0.0
        %1236 = vmatprep.subr.mxu0 0.0
        %1237 = vmatpush1.msra.mxu0 0.0
        %1238 = vmatprep.subr.mxu0 0.0
        %1239 = vmatpush1.msra.mxu0 0.0
        %1240 = vmatprep.subr.mxu0 0.0
        %1241 = vmatpush1.msra.mxu0 0.0
        %1242 = vmatprep.subr.mxu0 0.0
        %1243 = vmatpush1.msra.mxu0 0.0
        %1244 = vmatprep.subr.mxu0 0.0
        %1245 = vmatpush1.msra.mxu0 0.0
        %1246 = vmatprep.subr.mxu0 0.0
        %1247 = vmatpush1.msra.mxu0 0.0
        %1248 = vmatprep.subr.mxu0 0.0
        %1249 = vmatpush1.msra.mxu0 0.0
        %1250 = vmatprep.subr.mxu0 0.0
        %1251 = vmatpush1.msra.mxu0 %v246
        %1252 = vmatprep.subr.mxu0 0.0
        %1253 = vmatpush2.msra.mxu0 0.0
        %1254 = vmatprep.subr.mxu0 0.0
        %1255 = vmatpush2.msra.mxu0 0.0
        %1256 = vmatprep.subr.mxu0 0.0
        %1257 = vmatpush2.msra.mxu0 0.0
        %1258 = vmatprep.subr.mxu0 0.0
        %1259 = vmatpush2.msra.mxu0 0.0
        %1260 = vmatprep.subr.mxu0 0.0
        %1261 = vmatpush2.msra.mxu0 0.0
        %1262 = vmatprep.subr.mxu0 0.0
        %1263 = vmatpush2.msra.mxu0 0.0
        %1264 = vmatprep.subr.mxu0 0.0
        %1265 = vmatpush2.msra.mxu0 0.0
        %1266 = vmatprep.subr.mxu0 0.0
        %1267 = vmatpush2.msra.mxu0 0.0
        %1268 = vmatprep.subr.mxu0 0.0
        %1269 = vmatpush2.msra.mxu0 0.0
        %1270 = vmatprep.subr.mxu0 0.0
        %1271 = vmatpush2.msra.mxu0 0.0
        %1272 = vmatprep.subr.mxu0 0.0
        %1273 = vmatpush2.msra.mxu0 0.0
        %1274 = vmatprep.subr.mxu0 0.0
        %1275 = vmatpush2.msra.mxu0 0.0
        %1276 = vmatprep.subr.mxu0 0.0
        %1277 = vmatpush2.msra.mxu0 0.0
        %1278 = vmatprep.subr.mxu0 0.0
        %1279 = vmatpush2.msra.mxu0 0.0
        %1280 = vmatprep.subr.mxu0 0.0
        %1281 = vmatpush2.msra.mxu0 0.0
        %1282 = vmatprep.subr.mxu0 0.0
        %1283 = vmatpush2.msra.mxu0 0.0
        %1284 = vmatprep.mubr.f32.mxu0 0.0
        %1285 = vmatmul.mubr.f32.gmra.mxu0 %v1218
        %v1286 = vpop.f32.mrf.mxu0
        %v1287 = vadd.f32 0.0, %v1286
        %v1288 = vpop.f32.mrf.mxu0
        %1289 = vdwg.mxu0
        %v1291 = vsel %vm563, %v1214, 0
        %1293 = vmatprep.subr.mxu0 0.0
        %1294 = vmatpush1.msra.mxu0 0.0
        %1295 = vmatprep.subr.mxu0 0.0
        %1296 = vmatpush1.msra.mxu0 0.0
        %1297 = vmatprep.subr.mxu0 0.0
        %1298 = vmatpush1.msra.mxu0 0.0
        %1299 = vmatprep.subr.mxu0 0.0
        %1300 = vmatpush1.msra.mxu0 0.0
        %1301 = vmatprep.subr.mxu0 0.0
        %1302 = vmatpush1.msra.mxu0 0.0
        %1303 = vmatprep.subr.mxu0 0.0
        %1304 = vmatpush1.msra.mxu0 0.0
        %1305 = vmatprep.subr.mxu0 0.0
        %1306 = vmatpush1.msra.mxu0 0.0
        %1307 = vmatprep.subr.mxu0 0.0
        %1308 = vmatpush1.msra.mxu0 0.0
        %1309 = vmatprep.subr.mxu0 0.0
        %1310 = vmatpush1.msra.mxu0 0.0
        %1311 = vmatprep.subr.mxu0 0.0
        %1312 = vmatpush1.msra.mxu0 0.0
        %1313 = vmatprep.subr.mxu0 0.0
        %1314 = vmatpush1.msra.mxu0 0.0
        %1315 = vmatprep.subr.mxu0 0.0
        %1316 = vmatpush1.msra.mxu0 0.0
        %1317 = vmatprep.subr.mxu0 0.0
        %1318 = vmatpush1.msra.mxu0 0.0
        %1319 = vmatprep.subr.mxu0 0.0
        %1320 = vmatpush1.msra.mxu0 0.0
        %1321 = vmatprep.subr.mxu0 0.0
        %1322 = vmatpush1.msra.mxu0 0.0
        %1323 = vmatprep.subr.mxu0 0.0
        %1324 = vmatpush1.msra.mxu0 %v247
        %1325 = vmatprep.subr.mxu0 0.0
        %1326 = vmatpush2.msra.mxu0 0.0
        %1327 = vmatprep.subr.mxu0 0.0
        %1328 = vmatpush2.msra.mxu0 0.0
        %1329 = vmatprep.subr.mxu0 0.0
        %1330 = vmatpush2.msra.mxu0 0.0
        %1331 = vmatprep.subr.mxu0 0.0
        %1332 = vmatpush2.msra.mxu0 0.0
        %1333 = vmatprep.subr.mxu0 0.0
        %1334 = vmatpush2.msra.mxu0 0.0
        %1335 = vmatprep.subr.mxu0 0.0
        %1336 = vmatpush2.msra.mxu0 0.0
        %1337 = vmatprep.subr.mxu0 0.0
        %1338 = vmatpush2.msra.mxu0 0.0
        %1339 = vmatprep.subr.mxu0 0.0
        %1340 = vmatpush2.msra.mxu0 0.0
        %1341 = vmatprep.subr.mxu0 0.0
        %1342 = vmatpush2.msra.mxu0 0.0
        %1343 = vmatprep.subr.mxu0 0.0
        %1344 = vmatpush2.msra.mxu0 0.0
        %1345 = vmatprep.subr.mxu0 0.0
        %1346 = vmatpush2.msra.mxu0 0.0
        %1347 = vmatprep.subr.mxu0 0.0
        %1348 = vmatpush2.msra.mxu0 0.0
        %1349 = vmatprep.subr.mxu0 0.0
        %1350 = vmatpush2.msra.mxu0 0.0
        %1351 = vmatprep.subr.mxu0 0.0
        %1352 = vmatpush2.msra.mxu0 0.0
        %1353 = vmatprep.subr.mxu0 0.0
        %1354 = vmatpush2.msra.mxu0 0.0
        %1355 = vmatprep.subr.mxu0 0.0
        %1356 = vmatpush2.msra.mxu0 0.0
        %1357 = vmatprep.mubr.f32.mxu0 0.0
        %1358 = vmatmul.mubr.f32.gmra.mxu0 %v1291
        %v1359 = vpop.f32.mrf.mxu0
        %v1360 = vadd.f32 0.0, %v1359
        %v1361 = vpop.f32.mrf.mxu0
        %1362 = vdwg.mxu0
        %v1364 = vsel %vm563, %v1215, 0
        %1366 = vmatprep.subr.mxu0 0.0
        %1367 = vmatpush1.msra.mxu0 0.0
        %1368 = vmatprep.subr.mxu0 0.0
        %1369 = vmatpush1.msra.mxu0 0.0
        %1370 = vmatprep.subr.mxu0 0.0
        %1371 = vmatpush1.msra.mxu0 0.0
        %1372 = vmatprep.subr.mxu0 0.0
        %1373 = vmatpush1.msra.mxu0 0.0
        %1374 = vmatprep.subr.mxu0 0.0
        %1375 = vmatpush1.msra.mxu0 0.0
        %1376 = vmatprep.subr.mxu0 0.0
        %1377 = vmatpush1.msra.mxu0 0.0
        %1378 = vmatprep.subr.mxu0 0.0
        %1379 = vmatpush1.msra.mxu0 0.0
        %1380 = vmatprep.subr.mxu0 0.0
        %1381 = vmatpush1.msra.mxu0 0.0
        %1382 = vmatprep.subr.mxu0 0.0
        %1383 = vmatpush1.msra.mxu0 0.0
        %1384 = vmatprep.subr.mxu0 0.0
        %1385 = vmatpush1.msra.mxu0 0.0
        %1386 = vmatprep.subr.mxu0 0.0
        %1387 = vmatpush1.msra.mxu0 0.0
        %1388 = vmatprep.subr.mxu0 0.0
        %1389 = vmatpush1.msra.mxu0 0.0
        %1390 = vmatprep.subr.mxu0 0.0
        %1391 = vmatpush1.msra.mxu0 0.0
        %1392 = vmatprep.subr.mxu0 0.0
        %1393 = vmatpush1.msra.mxu0 0.0
        %1394 = vmatprep.subr.mxu0 0.0
        %1395 = vmatpush1.msra.mxu0 0.0
        %1396 = vmatprep.subr.mxu0 0.0
        %1397 = vmatpush1.msra.mxu0 %v248
        %1398 = vmatprep.subr.mxu0 0.0
        %1399 = vmatpush2.msra.mxu0 0.0
        %1400 = vmatprep.subr.mxu0 0.0
        %1401 = vmatpush2.msra.mxu0 0.0
        %1402 = vmatprep.subr.mxu0 0.0
        %1403 = vmatpush2.msra.mxu0 0.0
        %1404 = vmatprep.subr.mxu0 0.0
        %1405 = vmatpush2.msra.mxu0 0.0
        %1406 = vmatprep.subr.mxu0 0.0
        %1407 = vmatpush2.msra.mxu0 0.0
        %1408 = vmatprep.subr.mxu0 0.0
        %1409 = vmatpush2.msra.mxu0 0.0
        %1410 = vmatprep.subr.mxu0 0.0
        %1411 = vmatpush2.msra.mxu0 0.0
        %1412 = vmatprep.subr.mxu0 0.0
        %1413 = vmatpush2.msra.mxu0 0.0
        %1414 = vmatprep.subr.mxu0 0.0
        %1415 = vmatpush2.msra.mxu0 0.0
        %1416 = vmatprep.subr.mxu0 0.0
        %1417 = vmatpush2.msra.mxu0 0.0
        %1418 = vmatprep.subr.mxu0 0.0
        %1419 = vmatpush2.msra.mxu0 0.0
        %1420 = vmatprep.subr.mxu0 0.0
        %1421 = vmatpush2.msra.mxu0 0.0
        %1422 = vmatprep.subr.mxu0 0.0
        %1423 = vmatpush2.msra.mxu0 0.0
        %1424 = vmatprep.subr.mxu0 0.0
        %1425 = vmatpush2.msra.mxu0 0.0
        %1426 = vmatprep.subr.mxu0 0.0
        %1427 = vmatpush2.msra.mxu0 0.0
        %1428 = vmatprep.subr.mxu0 0.0
        %1429 = vmatpush2.msra.mxu0 0.0
        %1430 = vmatprep.mubr.f32.mxu0 0.0
        %1431 = vmatmul.mubr.f32.gmra.mxu0 %v1364
        %v1432 = vpop.f32.mrf.mxu0
        %v1433 = vadd.f32 0.0, %v1432
        %v1434 = vpop.f32.mrf.mxu0
        %1435 = vdwg.mxu0
        %v1437 = vsel %vm563, %v1216, 0
        %1439 = vmatprep.subr.mxu0 0.0
        %1440 = vmatpush1.msra.mxu0 0.0
        %1441 = vmatprep.subr.mxu0 0.0
        %1442 = vmatpush1.msra.mxu0 0.0
        %1443 = vmatprep.subr.mxu0 0.0
        %1444 = vmatpush1.msra.mxu0 0.0
        %1445 = vmatprep.subr.mxu0 0.0
        %1446 = vmatpush1.msra.mxu0 0.0
        %1447 = vmatprep.subr.mxu0 0.0
        %1448 = vmatpush1.msra.mxu0 0.0
        %1449 = vmatprep.subr.mxu0 0.0
        %1450 = vmatpush1.msra.mxu0 0.0
        %1451 = vmatprep.subr.mxu0 0.0
        %1452 = vmatpush1.msra.mxu0 0.0
        %1453 = vmatprep.subr.mxu0 0.0
        %1454 = vmatpush1.msra.mxu0 0.0
        %1455 = vmatprep.subr.mxu0 0.0
        %1456 = vmatpush1.msra.mxu0 0.0
        %1457 = vmatprep.subr.mxu0 0.0
        %1458 = vmatpush1.msra.mxu0 0.0
        %1459 = vmatprep.subr.mxu0 0.0
        %1460 = vmatpush1.msra.mxu0 0.0
        %1461 = vmatprep.subr.mxu0 0.0
        %1462 = vmatpush1.msra.mxu0 0.0
        %1463 = vmatprep.subr.mxu0 0.0
        %1464 = vmatpush1.msra.mxu0 0.0
        %1465 = vmatprep.subr.mxu0 0.0
        %1466 = vmatpush1.msra.mxu0 0.0
        %1467 = vmatprep.subr.mxu0 0.0
        %1468 = vmatpush1.msra.mxu0 0.0
        %1469 = vmatprep.subr.mxu0 0.0
        %1470 = vmatpush1.msra.mxu0 %v249
        %1471 = vmatprep.subr.mxu0 0.0
        %1472 = vmatpush2.msra.mxu0 0.0
        %1473 = vmatprep.subr.mxu0 0.0
        %1474 = vmatpush2.msra.mxu0 0.0
        %1475 = vmatprep.subr.mxu0 0.0
        %1476 = vmatpush2.msra.mxu0 0.0
        %1477 = vmatprep.subr.mxu0 0.0
        %1478 = vmatpush2.msra.mxu0 0.0
        %1479 = vmatprep.subr.mxu0 0.0
        %1480 = vmatpush2.msra.mxu0 0.0
        %1481 = vmatprep.subr.mxu0 0.0
        %1482 = vmatpush2.msra.mxu0 0.0
        %1483 = vmatprep.subr.mxu0 0.0
        %1484 = vmatpush2.msra.mxu0 0.0
        %1485 = vmatprep.subr.mxu0 0.0
        %1486 = vmatpush2.msra.mxu0 0.0
        %1487 = vmatprep.subr.mxu0 0.0
        %1488 = vmatpush2.msra.mxu0 0.0
        %1489 = vmatprep.subr.mxu0 0.0
        %1490 = vmatpush2.msra.mxu0 0.0
        %1491 = vmatprep.subr.mxu0 0.0
        %1492 = vmatpush2.msra.mxu0 0.0
        %1493 = vmatprep.subr.mxu0 0.0
        %1494 = vmatpush2.msra.mxu0 0.0
        %1495 = vmatprep.subr.mxu0 0.0
        %1496 = vmatpush2.msra.mxu0 0.0
        %1497 = vmatprep.subr.mxu0 0.0
        %1498 = vmatpush2.msra.mxu0 0.0
        %1499 = vmatprep.subr.mxu0 0.0
        %1500 = vmatpush2.msra.mxu0 0.0
        %1501 = vmatprep.subr.mxu0 0.0
        %1502 = vmatpush2.msra.mxu0 0.0
        %1503 = vmatprep.mubr.f32.mxu0 0.0
        %1504 = vmatmul.mubr.f32.gmra.mxu0 %v1437
        %v1505 = vpop.f32.mrf.mxu0
        %v1506 = vadd.f32 0.0, %v1505
        %v1507 = vpop.f32.mrf.mxu0
        %1508 = vdwg.mxu0
        %v1509 = vsel %vm276, %v1287, 0.0
        %v1510 = vsel %vm276, %v1360, 0.0
        %v1511 = vadd.f32 %v1509, %v1510
        %v1512 = vsel %vm276, %v1433, 0.0
        %v1513 = vadd.f32 %v1511, %v1512
        %v1514 = vsel %vm276, %v1506, 0.0
        %v1515 = vadd.f32 %v1513, %v1514
        %v1517 = vlaneseq
        %v1518 = vshrl.u32 %v1517, 7
        %v1519 = vsub.s32 0, %v1518
        %v1520 = vrot.slane %v250, %v1519
        %v1522 = vadd.f32 %v1515, %v1520
        %1523 = vst.msk [vmem:[%s215] sm:$0xff] %vm276, %v1522
        %s1524 = sand.u32 %s137, 1
        %s1525 = scalar_lea.sflag [#allocation3], %s1524
        %s1526 = sand.u32 %s137, 1
        %s1527 = smul.addr %s1526, 8
        %s1528 = scalar_lea.vmem [#allocation2], %s1527
        // Predicated region
        $region41: #{tpu_custom_call.1} parent=39 // pred_check
          %p1529 = pneg %p147
        $region42: #{tpu_custom_call.1} parent=39 // pred_check_branch
          %1531 = sbr.rel (%p1529) target = $region44
        $region43: #{tpu_custom_call.1} parent=39 // pred_region
          %s1533 = ssub.s32 128, 128
          %1534 = vsyncadd %s1525, %s1533
          %s1535 = smul.addr %s19, 128
          %s1536 = scalar_lea.hbm %s5, %s1535
          %s1538 = sshll.u32 %s1528, 4
          %s1539 = int_to_ptr.vmem [resolvable:$true] %s1538
          %1541 = dma.vmem_to_hbm [thread:$0]  %s1539, 128, %s1536, %s1525
        $region44: #{tpu_custom_call.1} parent=39 // pred_fallthru
          _
      $region40: #{tpu_custom_call.1} parent=5 // pred_fallthru
        _
      %p1542 = scmp.le.s32.totalorder 2, %s14
      // Predicated region
      $region45: #{tpu_custom_call.1} parent=5 // pred_check
        %p1543 = pneg %p1542
      $region46: #{tpu_custom_call.1} parent=5 // pred_check_branch
        %1545 = sbr.rel (%p1543) target = $region48
      $region47: #{tpu_custom_call.1} parent=5 // pred_region
        %s1546 = ssub.s32 %s14, 2
        // Predicated region
        $region49: #{tpu_custom_call.1} parent=47 // pred_check
          %p1547 = pneg %p153
        $region50: #{tpu_custom_call.1} parent=47 // pred_check_branch
          %1549 = sbr.rel (%p1547) target = $region52
        $region51: #{tpu_custom_call.1} parent=47 // pred_region
          %s1550 = sand.u32 %s138, 1
          %s1551 = scalar_lea.sflag [#allocation3], %s1550
          %s1552 = sand.u32 %s138, 1
          %s1553 = smul.addr %s1552, 8
          %s1554 = scalar_lea.vmem [#allocation2], %s1553
          %1555 = dma.done %s1551, 128
        $region52: #{tpu_custom_call.1} parent=47 // pred_fallthru
          _
      $region48: #{tpu_custom_call.1} parent=5 // pred_fallthru
        _
    $region6: #{tpu_custom_call.1} parent=1 // loop_footer
      %s18 = sadd.s32 1, %s14
    $region7: #{tpu_custom_call.1} parent=1 // loop_footer_branch
      %13 = sbr.rel target = $region3
    $region8: #{tpu_custom_call.1} parent=1 // loop_exit
      _
    %1556 = vsyncpa [#allocation3], 1
    %s1557 = scalar_lea.sflag [#allocation3], 1
    %1558 = vsyncpa %s1557, 1

</llo_original>
